<compile_context>
chip_gen: v7x
topology: tpu7x:2x2x1
jax: 0.10.0
libtpu: 0.0.40
codegen_flags: <defaults>
</compile_context>

<pallas_src>
import functools

import jax
import jax.numpy as jnp
from jax.experimental import pallas as pl
from jax.experimental.pallas import tpu as pltpu


def _round_up(x, m):
    return ((x + m - 1) // m) * m


# ---------------------------------------------------------------------------
# Fused kernel: one grid step == (one batch tile) x (one group of G heads)
# ---------------------------------------------------------------------------
def _metanet_fused_kernel(x_ref, hw_ref, hb_ref, fw_ref, fb_ref, o_ref,
                          *, G, CH, P_pad):
    # hidden chunk for this group: (TB, 1920) @ (1920, G*128) + bias, ReLU
    h = jnp.dot(x_ref[...], hw_ref[...], preferred_element_type=jnp.float32)
    h = jnp.maximum(h + hb_ref[...], 0.0)          # (TB, G*CH) f32
    h = h.astype(fw_ref.dtype)                     # bf16 operands into the MXU
    # per-head fc, unrolled over the G heads of this group (static, lane-aligned)
    for g in range(G):
        hg = h[:, g * CH:(g + 1) * CH]                              # (TB, CH)
        out_g = jnp.dot(hg, fw_ref[g], preferred_element_type=jnp.float32)
        o_ref[:, g * P_pad:(g + 1) * P_pad] = out_g + fb_ref[g]     # (TB, P_pad)


def metanet_forward_fused(x, hidden_w, hidden_b, fc_w, fc_b, group):
    """Fused MetaNet forward.

    x        : (B, 1920) float32
    hidden_w : (1920, 128*N_pad) bf16 (or f32), zero-padded heads
    hidden_b : (1, 128*N_pad)    f32
    fc_w     : (N_pad, 128, P_pad) bf16 (or f32), zero-padded per head
    fc_b     : (N_pad, 1, P_pad)   f32, zero-padded per head
    group    : G, number of heads processed per grid step (divides N_pad)
    returns  : (B_pad, N_pad*P_pad) f32 combined slab (caller slices/unpads)
    """
    B, K = x.shape
    N_pad, CH, P_pad = fc_w.shape
    G = group
    assert N_pad % G == 0
    n_groups = N_pad // G

    # batch: pad to a multiple of 16 sublanes (bf16 packing), tile at <=256 rows
    TB_MAX = 256
    B_pad = max(16, _round_up(B, 16))
    if B_pad > TB_MAX:
        TB = TB_MAX
        B_pad = _round_up(B_pad, TB)
    else:
        TB = B_pad
    if B_pad != B:
        x = jnp.pad(x, ((0, B_pad - B), (0, 0)))
    x = x.astype(hidden_w.dtype)
    n_batch = B_pad // TB

    itemsize = lambda a: a.size * a.dtype.itemsize
    flops = 2 * B_pad * K * CH * N_pad + 2 * B_pad * CH * P_pad * N_pad
    bytes_accessed = (itemsize(x)
                      + n_batch * (itemsize(hidden_w) + itemsize(hidden_b)
                                   + itemsize(fc_w) + itemsize(fc_b))
                      + B_pad * N_pad * P_pad * 4)

    kernel = functools.partial(_metanet_fused_kernel, G=G, CH=CH, P_pad=P_pad)

    return pl.pallas_call(
        kernel,
        out_shape=jax.ShapeDtypeStruct((B_pad, N_pad * P_pad), jnp.float32),
        grid_spec=pltpu.PrefetchScalarGridSpec(
            num_scalar_prefetch=0,
            grid=(n_batch, n_groups),
            in_specs=[
                # x: one batch tile, resident across the inner group axis
                pl.BlockSpec((TB, K), lambda bi, gi: (bi, 0)),
                # hidden weight: G*128-wide column block per group (pipelined)
                pl.BlockSpec((K, G * CH), lambda bi, gi: (0, gi)),
                pl.BlockSpec((1, G * CH), lambda bi, gi: (0, gi)),
                # stacked fc weights / biases: G heads per step
                pl.BlockSpec((G, CH, P_pad), lambda bi, gi: (gi, 0, 0)),
                pl.BlockSpec((G, 1, P_pad), lambda bi, gi: (gi, 0, 0)),
            ],
            # lane-dense combined output slab: (TB, G*P_pad) block per step
            out_specs=pl.BlockSpec((TB, G * P_pad), lambda bi, gi: (bi, gi)),
        ),
        compiler_params=pltpu.CompilerParams(
            # independent (batch tile, head group) steps -> megacore on v7x
            dimension_semantics=("parallel", "parallel"),
        ),
        cost_estimate=pl.CostEstimate(
            flops=flops, transcendentals=0, bytes_accessed=bytes_accessed),
    )(x, hidden_w, hidden_b, fc_w, fc_b)


# ---------------------------------------------------------------------------
# MetaNet (parameter container + forward)
# ---------------------------------------------------------------------------
class MetaNetPallas:
    IN_FEATURES = 1920
    CHUNK = 128

    def __init__(self, param_dict, key, weight_dtype=jnp.bfloat16):
        self.param_dict = dict(param_dict)
        self.param_num = len(param_dict)
        self.fc_dict = {name: i for i, name in enumerate(param_dict)}
        self.weight_dtype = weight_dtype
        self.p_pad = _round_up(max(param_dict.values()), 128)
        N = self.param_num

        # choose heads-per-step G and pad N up to a multiple of G
        self.group = self._choose_group(N, self.p_pad)
        self.n_pad = _round_up(N, self.group)

        def init_linear(k, fan_in, fan_out):
            # same scheme as torch.nn.Linear default init
            kw, kb = jax.random.split(k)
            bound = 1.0 / (fan_in ** 0.5)
            w = jax.random.uniform(kw, (fan_in, fan_out), jnp.float32, -bound, bound)
            b = jax.random.uniform(kb, (1, fan_out), jnp.float32, -bound, bound)
            return w, b

        keys = jax.random.split(key, N + 1)
        hw, hb = init_linear(keys[0], self.IN_FEATURES, self.CHUNK * N)
        pad_cols = self.CHUNK * (self.n_pad - N)
        self.hidden_w = jnp.pad(hw, ((0, 0), (0, pad_cols))).astype(weight_dtype)
        self.hidden_b = jnp.pad(hb, ((0, 0), (0, pad_cols)))          # f32

        fw_list, fb_list = [], []
        for name, i in self.fc_dict.items():
            p = param_dict[name]
            w, b = init_linear(keys[i + 1], self.CHUNK, p)
            fw_list.append(jnp.pad(w, ((0, 0), (0, self.p_pad - p))))
            fb_list.append(jnp.pad(b, ((0, 0), (0, self.p_pad - p))))
        # padded (dummy) heads: zero weight / zero bias
        for _ in range(self.n_pad - N):
            fw_list.append(jnp.zeros((self.CHUNK, self.p_pad), jnp.float32))
            fb_list.append(jnp.zeros((1, self.p_pad), jnp.float32))
        self.fc_w = jnp.stack(fw_list).astype(weight_dtype)   # (N_pad, 128, P_pad)
        self.fc_b = jnp.stack(fb_list)                         # (N_pad, 1, P_pad)

    @staticmethod
    def _choose_group(N, p_pad, k=1920, ch=128, tb=256, w_bytes=2,
                      budget_bytes=12 * 1024 * 1024):
        # Target 512-1024 hidden columns per step (G=4-8); keep >= 2 group
        # steps when N > 1 (so the "parallel" group axis can shard across
        # v7x's two TensorCores); shrink G until double-buffered blocks fit a
        # conservative VMEM budget that is safe on v5e (16 MiB default scoped)
        # and v7x (64 MiB physical / 32 MiB default scoped).
        g = min(8, N)
        if N > 1:
            g = min(g, (N + 1) // 2)
        g = max(g, 1)

        def vmem(gg):
            per_step = (tb * k * w_bytes            # x block (bf16)
                        + k * gg * ch * w_bytes      # hidden weight block
                        + gg * ch * 4                # hidden bias block
                        + gg * ch * p_pad * w_bytes  # fc weight block
                        + gg * p_pad * 4             # fc bias block
                        + tb * gg * p_pad * 4)       # output block (f32)
            return 2 * per_step                      # double-buffered

        while g > 1 and vmem(g) > budget_bytes:
            g -= 1
        return g

    def __call__(self, mean_std_features):
        B = mean_std_features.shape[0]
        out = metanet_forward_fused(
            mean_std_features, self.hidden_w, self.hidden_b,
            self.fc_w, self.fc_b, self.group)
        filters = {}
        for name, i in self.fc_dict.items():
            p = self.param_dict[name]
            filters[name] = out[:B, i * self.p_pad:i * self.p_pad + p]
        return filters

    # pure-JAX reference mirroring the kernel's numeric path (bf16 weight
    # storage, bf16 operands into the MXU, f32 accumulation)
    def reference(self, x):
        xw = x.astype(self.weight_dtype).astype(jnp.float32)
        hw = self.hidden_w.astype(jnp.float32)
        h = jnp.maximum(xw @ hw + self.hidden_b, 0.0)
        h = h.astype(self.weight_dtype).astype(jnp.float32)
        out = {}
        for name, i in self.fc_dict.items():
            p = self.param_dict[name]
            w = self.fc_w[i, :, :p].astype(jnp.float32)
            b = self.fc_b[i, :, :p]
            out[name] = h[:, i * self.CHUNK:(i + 1) * self.CHUNK] @ w + b
        return out


# ---------------------------------------------------------------------------
# Main
# ---------------------------------------------------------------------------
if __name__ == "__main__":
    key = jax.random.PRNGKey(0)
    k_params, k_x = jax.random.split(key)

    # small synthetic param_dict: three "layers" needing different filter counts
    param_dict = {"conv1": 16, "conv2": 32, "conv3": 8}
    net = MetaNetPallas(param_dict, k_params)

    batch = 2
    x = jax.random.normal(k_x, (batch, MetaNetPallas.IN_FEATURES), jnp.float32)

    filters = net(x)
    filters = jax.tree_util.tree_map(jax.block_until_ready, filters)

    # sanity check against the pure-JAX reference
    ref = net.reference(x)
    for name in param_dict:
        assert filters[name].shape == (batch, param_dict[name])
        err = float(jnp.max(jnp.abs(filters[name] - ref[name])))
        assert err < 3e-3, f"{name}: max abs err {err}"

    print("KERNEL_OK")
</pallas_src>

<mosaic_0001>
module attributes {stable_mosaic.version = 11 : i64} {
  func.func @_metanet_fused_kernel(%arg0: i32, %arg1: i32, %arg2: memref<16x1920xbf16, #tpu.memory_space<vmem>>, %arg3: memref<1920x256xbf16, #tpu.memory_space<vmem>>, %arg4: memref<1x256xf32, #tpu.memory_space<vmem>>, %arg5: memref<2x128x128xbf16, #tpu.memory_space<vmem>>, %arg6: memref<2x1x128xf32, #tpu.memory_space<vmem>>, %arg7: memref<16x256xf32, #tpu.memory_space<vmem>>) attributes {dimension_semantics = [#tpu.dimension_semantics<parallel>, #tpu.dimension_semantics<parallel>], iteration_bounds = array<i64: 1, 2>, scalar_prefetch = 0 : i64, scratch_operands = 0 : i64, tpu.core_type = #tpu.core_type<tc>, window_params = [{transform_indices = @transform_0, window_bounds = array<i64: 16, 1920>}, {transform_indices = @transform_1, window_bounds = array<i64: 1920, 256>}, {transform_indices = @transform_2, window_bounds = array<i64: 1, 256>}, {transform_indices = @transform_3, window_bounds = array<i64: 2, 128, 128>}, {transform_indices = @transform_4, window_bounds = array<i64: 2, 1, 128>}, {transform_indices = @transform_5, window_bounds = array<i64: 16, 256>}]} {
    %c0 = arith.constant 0 : index
    %c0_0 = arith.constant 0 : index
    %0 = vector.load %arg2[%c0, %c0_0] : memref<16x1920xbf16, #tpu.memory_space<vmem>>, vector<16x1920xbf16>
    %c0_1 = arith.constant 0 : index
    %c0_2 = arith.constant 0 : index
    %1 = vector.load %arg3[%c0_1, %c0_2] : memref<1920x256xbf16, #tpu.memory_space<vmem>>, vector<1920x256xbf16>
    %cst = arith.constant dense<0.000000e+00> : vector<16x256xf32>
    %2 = tpu.matmul %0, %1, %cst {dimension_numbers = #tpu.dot_dimension_numbers<[1], [0], [0], [1], [0, 0, 1, 1], [], []>} : vector<16x1920xbf16>, vector<1920x256xbf16>, vector<16x256xf32> -> vector<16x256xf32>
    %c0_3 = arith.constant 0 : index
    %c0_4 = arith.constant 0 : index
    %3 = vector.load %arg4[%c0_3, %c0_4] : memref<1x256xf32, #tpu.memory_space<vmem>>, vector<1x256xf32>
    %4 = vector.broadcast %3 : vector<1x256xf32> to vector<16x256xf32>
    %5 = arith.addf %2, %4 : vector<16x256xf32>
    %cst_5 = arith.constant 0.000000e+00 : f32
    %6 = vector.broadcast %cst_5 : f32 to vector<16x256xf32>
    %7 = arith.maximumf %5, %6 : vector<16x256xf32>
    %8 = arith.truncf %7 : vector<16x256xf32> to vector<16x256xbf16>
    %9 = vector.extract_strided_slice %8 {offsets = [0, 0], sizes = [16, 128], strides = [1, 1]} : vector<16x256xbf16> to vector<16x128xbf16>
    %c0_6 = arith.constant 0 : index
    %c0_7 = arith.constant 0 : index
    %c0_8 = arith.constant 0 : index
    %10 = vector.load %arg5[%c0_6, %c0_7, %c0_8] : memref<2x128x128xbf16, #tpu.memory_space<vmem>>, vector<1x128x128xbf16>
    %11 = vector.shape_cast %10 : vector<1x128x128xbf16> to vector<128x128xbf16>
    %cst_9 = arith.constant dense<0.000000e+00> : vector<16x128xf32>
    %12 = tpu.matmul %9, %11, %cst_9 {dimension_numbers = #tpu.dot_dimension_numbers<[1], [0], [0], [1], [0, 0, 1, 1], [], []>} : vector<16x128xbf16>, vector<128x128xbf16>, vector<16x128xf32> -> vector<16x128xf32>
    %c0_10 = arith.constant 0 : index
    %c0_11 = arith.constant 0 : index
    %c0_12 = arith.constant 0 : index
    %13 = vector.load %arg6[%c0_10, %c0_11, %c0_12] : memref<2x1x128xf32, #tpu.memory_space<vmem>>, vector<1x1x128xf32>
    %14 = vector.shape_cast %13 : vector<1x1x128xf32> to vector<1x128xf32>
    %15 = vector.broadcast %14 : vector<1x128xf32> to vector<16x128xf32>
    %16 = arith.addf %12, %15 : vector<16x128xf32>
    %c0_13 = arith.constant 0 : index
    %c0_14 = arith.constant 0 : index
    %17 = vector.load %arg7[%c0_13, %c0_14] : memref<16x256xf32, #tpu.memory_space<vmem>>, vector<16x128xf32>
    tpu.vector_store %arg7[%c0_13, %c0_14], %16 {strides = array<i32>} : memref<16x256xf32, #tpu.memory_space<vmem>>, vector<16x128xf32>,
    %18 = vector.extract_strided_slice %8 {offsets = [0, 128], sizes = [16, 128], strides = [1, 1]} : vector<16x256xbf16> to vector<16x128xbf16>
    %c1 = arith.constant 1 : index
    %c0_15 = arith.constant 0 : index
    %c0_16 = arith.constant 0 : index
    %19 = vector.load %arg5[%c1, %c0_15, %c0_16] : memref<2x128x128xbf16, #tpu.memory_space<vmem>>, vector<1x128x128xbf16>
    %20 = vector.shape_cast %19 : vector<1x128x128xbf16> to vector<128x128xbf16>
    %cst_17 = arith.constant dense<0.000000e+00> : vector<16x128xf32>
    %21 = tpu.matmul %18, %20, %cst_17 {dimension_numbers = #tpu.dot_dimension_numbers<[1], [0], [0], [1], [0, 0, 1, 1], [], []>} : vector<16x128xbf16>, vector<128x128xbf16>, vector<16x128xf32> -> vector<16x128xf32>
    %c1_18 = arith.constant 1 : index
    %c0_19 = arith.constant 0 : index
    %c0_20 = arith.constant 0 : index
    %22 = vector.load %arg6[%c1_18, %c0_19, %c0_20] : memref<2x1x128xf32, #tpu.memory_space<vmem>>, vector<1x1x128xf32>
    %23 = vector.shape_cast %22 : vector<1x1x128xf32> to vector<1x128xf32>
    %24 = vector.broadcast %23 : vector<1x128xf32> to vector<16x128xf32>
    %25 = arith.addf %21, %24 : vector<16x128xf32>
    %c0_21 = arith.constant 0 : index
    %c128 = arith.constant 128 : index
    %26 = vector.load %arg7[%c0_21, %c128] : memref<16x256xf32, #tpu.memory_space<vmem>>, vector<16x128xf32>
    tpu.vector_store %arg7[%c0_21, %c128], %25 {strides = array<i32>} : memref<16x256xf32, #tpu.memory_space<vmem>>, vector<16x128xf32>,
    return
  }
  func.func @transform_0(%arg0: i32, %arg1: i32) -> (i32, i32) {
    %c0_i32 = arith.constant 0 : i32
    %c0_i32_0 = arith.constant 0 : i32
    return %arg0, %c0_i32 : i32, i32
  }
  func.func @transform_1(%arg0: i32, %arg1: i32) -> (i32, i32) {
    %c0_i32 = arith.constant 0 : i32
    %c0_i32_0 = arith.constant 0 : i32
    return %c0_i32, %arg1 : i32, i32
  }
  func.func @transform_2(%arg0: i32, %arg1: i32) -> (i32, i32) {
    %c0_i32 = arith.constant 0 : i32
    %c0_i32_0 = arith.constant 0 : i32
    return %c0_i32, %arg1 : i32, i32
  }
  func.func @transform_3(%arg0: i32, %arg1: i32) -> (i32, i32, i32) {
    %c0_i32 = arith.constant 0 : i32
    %c0_i32_0 = arith.constant 0 : i32
    %c0_i32_1 = arith.constant 0 : i32
    return %arg1, %c0_i32, %c0_i32_0 : i32, i32, i32
  }
  func.func @transform_4(%arg0: i32, %arg1: i32) -> (i32, i32, i32) {
    %c0_i32 = arith.constant 0 : i32
    %c0_i32_0 = arith.constant 0 : i32
    %c0_i32_1 = arith.constant 0 : i32
    return %arg1, %c0_i32, %c0_i32_0 : i32, i32, i32
  }
  func.func @transform_5(%arg0: i32, %arg1: i32) -> (i32, i32) {
    %c0_i32 = arith.constant 0 : i32
    return %arg0, %arg1 : i32, i32
  }
}

</mosaic_0001>

<llo_original>
// kernel: tpu_custom_call.1
$region0: #{tpu_custom_call.1}
  #allocation0 [shape = 'u32[]', space=smem, size = 0x4, offset = 0x4, fixed_abs, tag = 'smem constant byte address 0x4 - core index']
  #allocation1 [shape = 'u32[144,128]{1,0:T(1,128)}', space=vmem, size = 0x12000, scoped, tag = 'internal scratch']
  %s0 = inlined_call_operand.hbm [shape: bf16[16,1920], index: 0, kind: input, shape index: {}]
  %s1 = inlined_call_operand.hbm [shape: bf16[1920,512], index: 1, kind: input, shape index: {}]
  %s2 = inlined_call_operand.hbm [shape: f32[1,512], index: 2, kind: input, shape index: {}]
  %s3 = inlined_call_operand.hbm [shape: bf16[4,128,128], index: 3, kind: input, shape index: {}]
  %s4 = inlined_call_operand.hbm [shape: f32[4,1,128], index: 4, kind: input, shape index: {}]
  %s5 = inlined_call_operand.hbm [shape: f32[16,512], index: 5, kind: output, shape index: {}]
  %s6 = sld [smem:[#allocation0]]
  $region73: #{tpu_custom_call.1} parent=0
    _
  %s8 = ssub.s32 1, %s6
  %s9 = scalar_select 0, %s8, %s6
  $region1: #{tpu_custom_call.1} parent=0
    #allocation2 [shape = 'u8[61440]{0}', space=vmem, size = 0xf000, scoped, tag = 'input window, operand 0, single buffered']
    #allocation3 [shape = 's32[2]{0}', space=sflag, size = 0x8, scoped, tag = 'scoped memory for tpu_custom_call.1']
    #allocation4 [shape = 's32[2]{0}', space=sflag, size = 0x8, scoped, tag = 'scoped memory for tpu_custom_call.1']
    #allocation5 [shape = 'u8[1966080]{0}', space=vmem, size = 0x1e0000, scoped, tag = 'input window, operand 1']
    #allocation6 [shape = 's32[2]{0}', space=sflag, size = 0x8, scoped, tag = 'scoped memory for tpu_custom_call.1']
    #allocation7 [shape = 'u8[2048]{0}', space=vmem, size = 0x800, scoped, tag = 'input window, operand 2']
    #allocation8 [shape = 'u8[131072]{0}', space=vmem, size = 0x20000, scoped, tag = 'input window, operand 3']
    #allocation9 [shape = 's32[2]{0}', space=sflag, size = 0x8, scoped, tag = 'scoped memory for tpu_custom_call.1']
    #allocation10 [shape = 'u8[2048]{0}', space=vmem, size = 0x800, scoped, tag = 'input window, operand 4']
    #allocation11 [shape = 'u8[32768]{0}', space=vmem, size = 0x8000, scoped, tag = 'output window, operand 0']
    %10 = vsyncpa [#allocation3], 0
    %11 = vsyncpa [#allocation6], 0
    %s12 = scalar_lea.sflag [#allocation6], 1
    %13 = vsyncpa %s12, 0
    %14 = vsyncpa [#allocation9], 0
    %s15 = scalar_lea.sflag [#allocation9], 1
    %16 = vsyncpa %s15, 0
    %17 = vsyncpa [#allocation4], 0
    %s18 = scalar_lea.sflag [#allocation4], 1
    %19 = vsyncpa %s18, 0
    loop: start=0, step=1, limit=4
    $region2: #{tpu_custom_call.1} parent=1 // loop_pre_header
      _
    $region3: #{tpu_custom_call.1} parent=1 // loop_header
      %s21 = sphi 0, %s25
      %p22 = scmp.ge.s32.totalorder %s21, 4
      %s28 = sphi 0, %s40
      %s29 = sphi 0, %s36
      %s30 = sphi 0, %s28
      %s31 = sphi 0, %s29
      %s32 = sphi 0, %s30
      %s33 = sphi 0, %s31
      %s43 = sphi 0, %s45
      %s46 = sphi 0, %s43
      %s47 = sphi 0, %s46
      %s63 = sphi 0, %s47
      %s69 = sphi 0, %s71
      %s72 = sphi 0, %s69
      %s73 = sphi 0, %s72
      %s89 = sphi 0, %s73
      %s95 = sphi 0, %s97
      %s98 = sphi 0, %s95
      %s99 = sphi 0, %s98
      %s115 = sphi 0, %s99
      %s121 = sphi 0, %s123
      %s124 = sphi 0, %s121
      %s125 = sphi 0, %s124
      %s141 = sphi 0, %s125
      %s147 = sphi 0, %s149
      %s150 = sphi 0, %s147
      %s151 = sphi 0, %s150
      %s167 = sphi 0, %s151
      %s175 = sphi 0, %s177
      %s178 = sphi 0, %s175
      %s179 = sphi 0, %s178
      %s195 = sphi 0, %s179
    $region4: #{tpu_custom_call.1} parent=1 // loop_header_branch
      %24 = sbr.rel (%p22) target = $region8
    $region5: #{tpu_custom_call.1} parent=1 // loop_body
      %s26 = ssub.s32 %s21, 1
      %s27 = ssub.s32 %s21, 2
      %s34 = sadd.s32 1, %s29
      %p35 = scmp.ge.s32.totalorder %s34, 2
      %s36 = scalar_select %p35, 0, %s34
      %s37 = sadd.s32 1, %s28
      %s38 = scalar_select %p35, %s37, %s28
      %p39 = scmp.ge.s32.totalorder %s38, 1
      %s40 = scalar_select %p39, 0, %s38
      %s41 = ssub.s32 %s28, %s40
      %p42 = scmp.eq.s32.totalorder %s41, 0
      %s44 = sadd.s32 %s43, 1
      %s45 = scalar_select %p42, %s43, %s44
      %p48 = pneg %p42
      %p49 = scmp.eq.s32.totalorder %s21, 1
      %p50 = por %p48, %p49
      %p51 = scmp.ne.s32.totalorder %s43, %s46
      %p52 = scmp.eq.s32.totalorder %s21, 0
      %p53 = por %p51, %p52
      %p54 = scmp.ne.s32.totalorder %s43, %s46
      %p55 = scmp.eq.s32.totalorder %s26, 1
      %p56 = por %p54, %p55
      %p57 = scmp.ne.s32.totalorder %s46, %s47
      %p58 = scmp.eq.s32.totalorder %s26, 0
      %p59 = por %p57, %p58
      %p60 = scmp.ne.s32.totalorder %s46, %s47
      %p61 = scmp.eq.s32.totalorder %s27, 1
      %p62 = por %p60, %p61
      %p64 = scmp.ne.s32.totalorder %s47, %s63
      %p65 = scmp.eq.s32.totalorder %s27, 0
      %p66 = por %p64, %p65
      %s67 = ssub.s32 %s29, %s36
      %p68 = scmp.eq.s32.totalorder %s67, 0
      %s70 = sadd.s32 %s69, 1
      %s71 = scalar_select %p68, %s69, %s70
      %p74 = pneg %p68
      %p75 = scmp.eq.s32.totalorder %s21, 1
      %p76 = por %p74, %p75
      %p77 = scmp.ne.s32.totalorder %s69, %s72
      %p78 = scmp.eq.s32.totalorder %s21, 0
      %p79 = por %p77, %p78
      %p80 = scmp.ne.s32.totalorder %s69, %s72
      %p81 = scmp.eq.s32.totalorder %s26, 1
      %p82 = por %p80, %p81
      %p83 = scmp.ne.s32.totalorder %s72, %s73
      %p84 = scmp.eq.s32.totalorder %s26, 0
      %p85 = por %p83, %p84
      %p86 = scmp.ne.s32.totalorder %s72, %s73
      %p87 = scmp.eq.s32.totalorder %s27, 1
      %p88 = por %p86, %p87
      %p90 = scmp.ne.s32.totalorder %s73, %s89
      %p91 = scmp.eq.s32.totalorder %s27, 0
      %p92 = por %p90, %p91
      %s93 = ssub.s32 %s29, %s36
      %p94 = scmp.eq.s32.totalorder %s93, 0
      %s96 = sadd.s32 %s95, 1
      %s97 = scalar_select %p94, %s95, %s96
      %p100 = pneg %p94
      %p101 = scmp.eq.s32.totalorder %s21, 1
      %p102 = por %p100, %p101
      %p103 = scmp.ne.s32.totalorder %s95, %s98
      %p104 = scmp.eq.s32.totalorder %s21, 0
      %p105 = por %p103, %p104
      %p106 = scmp.ne.s32.totalorder %s95, %s98
      %p107 = scmp.eq.s32.totalorder %s26, 1
      %p108 = por %p106, %p107
      %p109 = scmp.ne.s32.totalorder %s98, %s99
      %p110 = scmp.eq.s32.totalorder %s26, 0
      %p111 = por %p109, %p110
      %p112 = scmp.ne.s32.totalorder %s98, %s99
      %p113 = scmp.eq.s32.totalorder %s27, 1
      %p114 = por %p112, %p113
      %p116 = scmp.ne.s32.totalorder %s99, %s115
      %p117 = scmp.eq.s32.totalorder %s27, 0
      %p118 = por %p116, %p117
      %s119 = ssub.s32 %s29, %s36
      %p120 = scmp.eq.s32.totalorder %s119, 0
      %s122 = sadd.s32 %s121, 1
      %s123 = scalar_select %p120, %s121, %s122
      %p126 = pneg %p120
      %p127 = scmp.eq.s32.totalorder %s21, 1
      %p128 = por %p126, %p127
      %p129 = scmp.ne.s32.totalorder %s121, %s124
      %p130 = scmp.eq.s32.totalorder %s21, 0
      %p131 = por %p129, %p130
      %p132 = scmp.ne.s32.totalorder %s121, %s124
      %p133 = scmp.eq.s32.totalorder %s26, 1
      %p134 = por %p132, %p133
      %p135 = scmp.ne.s32.totalorder %s124, %s125
      %p136 = scmp.eq.s32.totalorder %s26, 0
      %p137 = por %p135, %p136
      %p138 = scmp.ne.s32.totalorder %s124, %s125
      %p139 = scmp.eq.s32.totalorder %s27, 1
      %p140 = por %p138, %p139
      %p142 = scmp.ne.s32.totalorder %s125, %s141
      %p143 = scmp.eq.s32.totalorder %s27, 0
      %p144 = por %p142, %p143
      %s145 = ssub.s32 %s29, %s36
      %p146 = scmp.eq.s32.totalorder %s145, 0
      %s148 = sadd.s32 %s147, 1
      %s149 = scalar_select %p146, %s147, %s148
      %p152 = pneg %p146
      %p153 = scmp.eq.s32.totalorder %s21, 1
      %p154 = por %p152, %p153
      %p155 = scmp.ne.s32.totalorder %s147, %s150
      %p156 = scmp.eq.s32.totalorder %s21, 0
      %p157 = por %p155, %p156
      %p158 = scmp.ne.s32.totalorder %s147, %s150
      %p159 = scmp.eq.s32.totalorder %s26, 1
      %p160 = por %p158, %p159
      %p161 = scmp.ne.s32.totalorder %s150, %s151
      %p162 = scmp.eq.s32.totalorder %s26, 0
      %p163 = por %p161, %p162
      %p164 = scmp.ne.s32.totalorder %s150, %s151
      %p165 = scmp.eq.s32.totalorder %s27, 1
      %p166 = por %p164, %p165
      %p168 = scmp.ne.s32.totalorder %s151, %s167
      %p169 = scmp.eq.s32.totalorder %s27, 0
      %p170 = por %p168, %p169
      %s171 = ssub.s32 %s28, %s40
      %s172 = ssub.s32 %s29, %s36
      %s173 = sor.u32 %s171, %s172
      %p174 = scmp.eq.s32.totalorder %s173, 0
      %s176 = sadd.s32 %s175, 1
      %s177 = scalar_select %p174, %s175, %s176
      %p180 = pneg %p174
      %p181 = scmp.eq.s32.totalorder %s21, 1
      %p182 = por %p180, %p181
      %p183 = scmp.ne.s32.totalorder %s175, %s178
      %p184 = scmp.eq.s32.totalorder %s21, 0
      %p185 = por %p183, %p184
      %p186 = scmp.ne.s32.totalorder %s175, %s178
      %p187 = scmp.eq.s32.totalorder %s26, 1
      %p188 = por %p186, %p187
      %p189 = scmp.ne.s32.totalorder %s178, %s179
      %p190 = scmp.eq.s32.totalorder %s26, 0
      %p191 = por %p189, %p190
      %p192 = scmp.ne.s32.totalorder %s178, %s179
      %p193 = scmp.eq.s32.totalorder %s27, 1
      %p194 = por %p192, %p193
      %p196 = scmp.ne.s32.totalorder %s179, %s195
      %p197 = scmp.eq.s32.totalorder %s27, 0
      %p198 = por %p196, %p197
      %p199 = scmp.le.s32.totalorder 1, %s21
      %p200 = scmp.lt.s32.totalorder %s21, 3
      %p201 = pnand %p199, %p200
      %p202 = pneg %p201
      // Predicated region
      $region9: #{tpu_custom_call.1} parent=5 // pred_check
        _
      $region10: #{tpu_custom_call.1} parent=5 // pred_check_branch
        %204 = sbr.rel (%p201) target = $region12
      $region11: #{tpu_custom_call.1} parent=5 // pred_region
        %s205 = ssub.s32 %s21, 1
        // Predicated region
        $region13: #{tpu_custom_call.1} parent=11 // pred_check
          %p206 = pneg %p59
        $region14: #{tpu_custom_call.1} parent=11 // pred_check_branch
          %208 = sbr.rel (%p206) target = $region16
        $region15: #{tpu_custom_call.1} parent=11 // pred_region
          %s209 = smul.u32 2, %s30
          %s211 = ssub.s32 1920, 1920
          %212 = vsyncadd [#allocation3], %s211
          %s213 = smul.addr %s209, 15
          %s214 = smul.addr %s213, 64
          %s215 = scalar_lea.hbm %s0, %s214
          %s216 = sshll.u32 [#allocation2], 4
          %s217 = int_to_ptr.vmem [resolvable:$true] %s216
          %222 = dma.hbm_to_vmem [thread:$0]  %s215, 1920, %s217, [#allocation3], 960, 960, 60
        $region16: #{tpu_custom_call.1} parent=11 // pred_fallthru
          _
      $region12: #{tpu_custom_call.1} parent=5 // pred_fallthru
        _
      %p223 = scmp.lt.s32.totalorder %s21, 2
      // Predicated region
      $region17: #{tpu_custom_call.1} parent=5 // pred_check
        %p224 = pneg %p223
      $region18: #{tpu_custom_call.1} parent=5 // pred_check_branch
        %226 = sbr.rel (%p224) target = $region20
      $region19: #{tpu_custom_call.1} parent=5 // pred_region
        // Predicated region
        $region21: #{tpu_custom_call.1} parent=19 // pred_check
          %p227 = pneg %p79
        $region22: #{tpu_custom_call.1} parent=19 // pred_check_branch
          %229 = sbr.rel (%p227) target = $region24
        $region23: #{tpu_custom_call.1} parent=19 // pred_region
          %s230 = sand.u32 %s21, 1
          %s231 = scalar_lea.sflag [#allocation6], %s230
          %s232 = sand.u32 %s69, 1
          %s233 = smul.addr %s232, 1920
          %s234 = scalar_lea.vmem [#allocation5], %s233
          %s235 = smul.u32 2, %s29
          %s237 = ssub.s32 30720, 30720
          %238 = vsyncadd %s231, %s237
          %s239 = smul.addr %s235, 64
          %s240 = scalar_lea.hbm %s1, %s239
          %s241 = sshll.u32 %s234, 4
          %s242 = int_to_ptr.vmem [resolvable:$true] %s241
          %247 = dma.hbm_to_vmem [thread:$0]  %s240, 30720, %s242, %s231, 256, 128, 8
        $region24: #{tpu_custom_call.1} parent=19 // pred_fallthru
          _
        // Predicated region
        $region25: #{tpu_custom_call.1} parent=19 // pred_check
          %p248 = pneg %p105
        $region26: #{tpu_custom_call.1} parent=19 // pred_check_branch
          %250 = sbr.rel (%p248) target = $region28
        $region27: #{tpu_custom_call.1} parent=19 // pred_region
          %s251 = sand.u32 %s21, 1
          %s252 = scalar_lea.sflag [#allocation6], %s251
          %s253 = sand.u32 %s95, 1
          %s254 = smul.addr %s253, 2
          %s255 = scalar_lea.vmem [#allocation7], %s254
          %s256 = smul.u32 2, %s29
          %s258 = ssub.s32 32, 32
          %259 = vsyncadd %s252, %s258
          %s260 = smul.addr %s256, 16
          %s261 = scalar_lea.hbm %s2, %s260
          %s263 = sshll.u32 %s255, 4
          %s264 = int_to_ptr.vmem [resolvable:$true] %s263
          %266 = dma.hbm_to_vmem [thread:$0]  %s261, 32, %s264, %s252
        $region28: #{tpu_custom_call.1} parent=19 // pred_fallthru
          _
        // Predicated region
        $region29: #{tpu_custom_call.1} parent=19 // pred_check
          %p267 = pneg %p131
        $region30: #{tpu_custom_call.1} parent=19 // pred_check_branch
          %269 = sbr.rel (%p267) target = $region32
        $region31: #{tpu_custom_call.1} parent=19 // pred_region
          %s270 = sand.u32 %s21, 1
          %s271 = scalar_lea.sflag [#allocation9], %s270
          %s272 = sand.u32 %s121, 1
          %s273 = smul.addr %s272, 128
          %s274 = scalar_lea.vmem [#allocation8], %s273
          %s275 = smul.u32 2, %s29
          %s277 = ssub.s32 2048, 2048
          %278 = vsyncadd %s271, %s277
          %s279 = smul.addr %s275, 16
          %s280 = smul.addr %s279, 64
          %s281 = scalar_lea.hbm %s3, %s280
          %s282 = sshll.u32 %s274, 4
          %s283 = int_to_ptr.vmem [resolvable:$true] %s282
          %288 = dma.hbm_to_vmem [thread:$0]  %s281, 2048, %s283, %s271, 64, 64, 4
        $region32: #{tpu_custom_call.1} parent=19 // pred_fallthru
          _
        // Predicated region
        $region33: #{tpu_custom_call.1} parent=19 // pred_check
          %p289 = pneg %p157
        $region34: #{tpu_custom_call.1} parent=19 // pred_check_branch
          %291 = sbr.rel (%p289) target = $region36
        $region35: #{tpu_custom_call.1} parent=19 // pred_region
          %s292 = sand.u32 %s21, 1
          %s293 = scalar_lea.sflag [#allocation9], %s292
          %s294 = sand.u32 %s147, 1
          %s295 = smul.addr %s294, 2
          %s296 = scalar_lea.vmem [#allocation10], %s295
          %s297 = smul.u32 2, %s29
          %s299 = ssub.s32 32, 32
          %300 = vsyncadd %s293, %s299
          %s301 = smul.addr %s297, 16
          %s302 = scalar_lea.hbm %s4, %s301
          %s303 = sshll.u32 %s296, 4
          %s304 = int_to_ptr.vmem [resolvable:$true] %s303
          %309 = dma.hbm_to_vmem [thread:$0]  %s302, 32, %s304, %s293, 16, 16, 1
        $region36: #{tpu_custom_call.1} parent=19 // pred_fallthru
          _
      $region20: #{tpu_custom_call.1} parent=5 // pred_fallthru
        _
      %p310 = scmp.le.s32.totalorder 1, %s21
      %p311 = scmp.lt.s32.totalorder %s21, 3
      %p312 = pnand %p310, %p311
      %p313 = pneg %p312
      // Predicated region
      $region37: #{tpu_custom_call.1} parent=5 // pred_check
        _
      $region38: #{tpu_custom_call.1} parent=5 // pred_check_branch
        %315 = sbr.rel (%p312) target = $region40
      $region39: #{tpu_custom_call.1} parent=5 // pred_region
        %s316 = ssub.s32 %s21, 1
        // Predicated region
        $region41: #{tpu_custom_call.1} parent=39 // pred_check
          %p317 = pneg %p59
        $region42: #{tpu_custom_call.1} parent=39 // pred_check_branch
          %319 = sbr.rel (%p317) target = $region44
        $region43: #{tpu_custom_call.1} parent=39 // pred_region
          %320 = dma.done [#allocation3], 1920
        $region44: #{tpu_custom_call.1} parent=39 // pred_fallthru
          _
        %s321 = sand.u32 %s26, 1
        %s322 = scalar_lea.sflag [#allocation6], %s321
        %s323 = sand.u32 %s72, 1
        %s324 = smul.addr %s323, 1920
        %s325 = scalar_lea.vmem [#allocation5], %s324
        // Predicated region
        $region45: #{tpu_custom_call.1} parent=39 // pred_check
          %p326 = pneg %p85
        $region46: #{tpu_custom_call.1} parent=39 // pred_check_branch
          %328 = sbr.rel (%p326) target = $region48
        $region47: #{tpu_custom_call.1} parent=39 // pred_region
          %329 = dma.done %s322, 30720
        $region48: #{tpu_custom_call.1} parent=39 // pred_fallthru
          _
        %s330 = sand.u32 %s26, 1
        %s331 = scalar_lea.sflag [#allocation6], %s330
        %s332 = sand.u32 %s98, 1
        %s333 = smul.addr %s332, 2
        %s334 = scalar_lea.vmem [#allocation7], %s333
        // Predicated region
        $region49: #{tpu_custom_call.1} parent=39 // pred_check
          %p335 = pneg %p111
        $region50: #{tpu_custom_call.1} parent=39 // pred_check_branch
          %337 = sbr.rel (%p335) target = $region52
        $region51: #{tpu_custom_call.1} parent=39 // pred_region
          %338 = dma.done %s331, 32
        $region52: #{tpu_custom_call.1} parent=39 // pred_fallthru
          _
        %s339 = sand.u32 %s26, 1
        %s340 = scalar_lea.sflag [#allocation9], %s339
        %s341 = sand.u32 %s124, 1
        %s342 = smul.addr %s341, 128
        %s343 = scalar_lea.vmem [#allocation8], %s342
        // Predicated region
        $region53: #{tpu_custom_call.1} parent=39 // pred_check
          %p344 = pneg %p137
        $region54: #{tpu_custom_call.1} parent=39 // pred_check_branch
          %346 = sbr.rel (%p344) target = $region56
        $region55: #{tpu_custom_call.1} parent=39 // pred_region
          %347 = dma.done %s340, 2048
        $region56: #{tpu_custom_call.1} parent=39 // pred_fallthru
          _
        %s348 = sand.u32 %s26, 1
        %s349 = scalar_lea.sflag [#allocation9], %s348
        %s350 = sand.u32 %s150, 1
        %s351 = smul.addr %s350, 2
        %s352 = scalar_lea.vmem [#allocation10], %s351
        // Predicated region
        $region57: #{tpu_custom_call.1} parent=39 // pred_check
          %p353 = pneg %p163
        $region58: #{tpu_custom_call.1} parent=39 // pred_check_branch
          %355 = sbr.rel (%p353) target = $region60
        $region59: #{tpu_custom_call.1} parent=39 // pred_region
          %356 = dma.done %s349, 32
        $region60: #{tpu_custom_call.1} parent=39 // pred_fallthru
          _
        %p357 = pneg %p59
        %p358 = pneg %p56
        %s359 = sand.u32 %s26, 1
        %s360 = scalar_lea.sflag [#allocation6], %s359
        %s361 = sand.u32 %s72, 1
        %s362 = smul.addr %s361, 1920
        %s363 = scalar_lea.vmem [#allocation5], %s362
        %p364 = pneg %p85
        %p365 = pneg %p82
        %s366 = sand.u32 %s26, 1
        %s367 = scalar_lea.sflag [#allocation6], %s366
        %s368 = sand.u32 %s98, 1
        %s369 = smul.addr %s368, 2
        %s370 = scalar_lea.vmem [#allocation7], %s369
        %p371 = pneg %p111
        %p372 = pneg %p108
        %s373 = sand.u32 %s26, 1
        %s374 = scalar_lea.sflag [#allocation9], %s373
        %s375 = sand.u32 %s124, 1
        %s376 = smul.addr %s375, 128
        %s377 = scalar_lea.vmem [#allocation8], %s376
        %p378 = pneg %p137
        %p379 = pneg %p134
        %s380 = sand.u32 %s26, 1
        %s381 = scalar_lea.sflag [#allocation9], %s380
        %s382 = sand.u32 %s150, 1
        %s383 = smul.addr %s382, 2
        %s384 = scalar_lea.vmem [#allocation10], %s383
        %p385 = pneg %p163
        %p386 = pneg %p160
        %p387 = pneg %p191
        %p388 = pneg %p188
        %s389 = sand.u32 %s178, 1
        %s390 = scalar_lea.sflag [#allocation4], %s389
        %s391 = sand.u32 %s178, 1
        %s392 = smul.addr %s391, 32
        %s393 = scalar_lea.vmem [#allocation11], %s392
        %s394 = smul.u32 2, %s30
        %s395 = smul.u32 2, %s31
        %s396 = smul.u32 2, %s31
        %s397 = smul.u32 2, %s31
        %s398 = smul.u32 2, %s31
        %s399 = smul.u32 2, %s30
        %s400 = smul.u32 2, %s31
        %v402 = vld [vmem:[#allocation2] sm:$0xff]
        %v403 = vld [vmem:[#allocation2 + $0x8] sm:$0xff]
        %v404 = vld [vmem:[#allocation2 + $0x10] sm:$0xff]
        %v405 = vld [vmem:[#allocation2 + $0x18] sm:$0xff]
        %v406 = vld [vmem:[#allocation2 + $0x20] sm:$0xff]
        %v407 = vld [vmem:[#allocation2 + $0x28] sm:$0xff]
        %v408 = vld [vmem:[#allocation2 + $0x30] sm:$0xff]
        %v409 = vld [vmem:[#allocation2 + $0x38] sm:$0xf]
        %v410 = vld [vmem:[#allocation2 + $0x3c] sm:$0xff]
        %v411 = vld [vmem:[#allocation2 + $0x44] sm:$0xff]
        %v412 = vld [vmem:[#allocation2 + $0x4c] sm:$0xff]
        %v413 = vld [vmem:[#allocation2 + $0x54] sm:$0xff]
        %v414 = vld [vmem:[#allocation2 + $0x5c] sm:$0xff]
        %v415 = vld [vmem:[#allocation2 + $0x64] sm:$0xff]
        %v416 = vld [vmem:[#allocation2 + $0x6c] sm:$0xff]
        %v417 = vld [vmem:[#allocation2 + $0x74] sm:$0xf]
        %v418 = vld [vmem:[%s325] sm:$0xff]
        %v419 = vld [vmem:[%s325 + $0x8] sm:$0xff]
        %v420 = vld [vmem:[%s325 + $0x10] sm:$0xff]
        %v421 = vld [vmem:[%s325 + $0x18] sm:$0xff]
        %v422 = vld [vmem:[%s325 + $0x20] sm:$0xff]
        %v423 = vld [vmem:[%s325 + $0x28] sm:$0xff]
        %v424 = vld [vmem:[%s325 + $0x30] sm:$0xff]
        %v425 = vld [vmem:[%s325 + $0x38] sm:$0xff]
        %v426 = vld [vmem:[%s325 + $0x40] sm:$0xff]
        %v427 = vld [vmem:[%s325 + $0x48] sm:$0xff]
        %v428 = vld [vmem:[%s325 + $0x50] sm:$0xff]
        %v429 = vld [vmem:[%s325 + $0x58] sm:$0xff]
        %v430 = vld [vmem:[%s325 + $0x60] sm:$0xff]
        %v431 = vld [vmem:[%s325 + $0x68] sm:$0xff]
        %v432 = vld [vmem:[%s325 + $0x70] sm:$0xff]
        %v433 = vld [vmem:[%s325 + $0x78] sm:$0xff]
        %v434 = vld [vmem:[%s325 + $0x80] sm:$0xff]
        %v435 = vld [vmem:[%s325 + $0x88] sm:$0xff]
        %v436 = vld [vmem:[%s325 + $0x90] sm:$0xff]
        %v437 = vld [vmem:[%s325 + $0x98] sm:$0xff]
        %v438 = vld [vmem:[%s325 + $0xa0] sm:$0xff]
        %v439 = vld [vmem:[%s325 + $0xa8] sm:$0xff]
        %v440 = vld [vmem:[%s325 + $0xb0] sm:$0xff]
        %v441 = vld [vmem:[%s325 + $0xb8] sm:$0xff]
        %v442 = vld [vmem:[%s325 + $0xc0] sm:$0xff]
        %v443 = vld [vmem:[%s325 + $0xc8] sm:$0xff]
        %v444 = vld [vmem:[%s325 + $0xd0] sm:$0xff]
        %v445 = vld [vmem:[%s325 + $0xd8] sm:$0xff]
        %v446 = vld [vmem:[%s325 + $0xe0] sm:$0xff]
        %v447 = vld [vmem:[%s325 + $0xe8] sm:$0xff]
        %v448 = vld [vmem:[%s325 + $0xf0] sm:$0xff]
        %v449 = vld [vmem:[%s325 + $0xf8] sm:$0xff]
        %v450 = vld [vmem:[%s325 + $0x100] sm:$0xff]
        %v451 = vld [vmem:[%s325 + $0x108] sm:$0xff]
        %v452 = vld [vmem:[%s325 + $0x110] sm:$0xff]
        %v453 = vld [vmem:[%s325 + $0x118] sm:$0xff]
        %v454 = vld [vmem:[%s325 + $0x120] sm:$0xff]
        %v455 = vld [vmem:[%s325 + $0x128] sm:$0xff]
        %v456 = vld [vmem:[%s325 + $0x130] sm:$0xff]
        %v457 = vld [vmem:[%s325 + $0x138] sm:$0xff]
        %v458 = vld [vmem:[%s325 + $0x140] sm:$0xff]
        %v459 = vld [vmem:[%s325 + $0x148] sm:$0xff]
        %v460 = vld [vmem:[%s325 + $0x150] sm:$0xff]
        %v461 = vld [vmem:[%s325 + $0x158] sm:$0xff]
        %v462 = vld [vmem:[%s325 + $0x160] sm:$0xff]
        %v463 = vld [vmem:[%s325 + $0x168] sm:$0xff]
        %v464 = vld [vmem:[%s325 + $0x170] sm:$0xff]
        %v465 = vld [vmem:[%s325 + $0x178] sm:$0xff]
        %v466 = vld [vmem:[%s325 + $0x180] sm:$0xff]
        %v467 = vld [vmem:[%s325 + $0x188] sm:$0xff]
        %v468 = vld [vmem:[%s325 + $0x190] sm:$0xff]
        %v469 = vld [vmem:[%s325 + $0x198] sm:$0xff]
        %v470 = vld [vmem:[%s325 + $0x1a0] sm:$0xff]
        %v471 = vld [vmem:[%s325 + $0x1a8] sm:$0xff]
        %v472 = vld [vmem:[%s325 + $0x1b0] sm:$0xff]
        %v473 = vld [vmem:[%s325 + $0x1b8] sm:$0xff]
        %v474 = vld [vmem:[%s325 + $0x1c0] sm:$0xff]
        %v475 = vld [vmem:[%s325 + $0x1c8] sm:$0xff]
        %v476 = vld [vmem:[%s325 + $0x1d0] sm:$0xff]
        %v477 = vld [vmem:[%s325 + $0x1d8] sm:$0xff]
        %v478 = vld [vmem:[%s325 + $0x1e0] sm:$0xff]
        %v479 = vld [vmem:[%s325 + $0x1e8] sm:$0xff]
        %v480 = vld [vmem:[%s325 + $0x1f0] sm:$0xff]
        %v481 = vld [vmem:[%s325 + $0x1f8] sm:$0xff]
        %v482 = vld [vmem:[%s325 + $0x200] sm:$0xff]
        %v483 = vld [vmem:[%s325 + $0x208] sm:$0xff]
        %v484 = vld [vmem:[%s325 + $0x210] sm:$0xff]
        %v485 = vld [vmem:[%s325 + $0x218] sm:$0xff]
        %v486 = vld [vmem:[%s325 + $0x220] sm:$0xff]
        %v487 = vld [vmem:[%s325 + $0x228] sm:$0xff]
        %v488 = vld [vmem:[%s325 + $0x230] sm:$0xff]
        %v489 = vld [vmem:[%s325 + $0x238] sm:$0xff]
        %v490 = vld [vmem:[%s325 + $0x240] sm:$0xff]
        %v491 = vld [vmem:[%s325 + $0x248] sm:$0xff]
        %v492 = vld [vmem:[%s325 + $0x250] sm:$0xff]
        %v493 = vld [vmem:[%s325 + $0x258] sm:$0xff]
        %v494 = vld [vmem:[%s325 + $0x260] sm:$0xff]
        %v495 = vld [vmem:[%s325 + $0x268] sm:$0xff]
        %v496 = vld [vmem:[%s325 + $0x270] sm:$0xff]
        %v497 = vld [vmem:[%s325 + $0x278] sm:$0xff]
        %v498 = vld [vmem:[%s325 + $0x280] sm:$0xff]
        %v499 = vld [vmem:[%s325 + $0x288] sm:$0xff]
        %v500 = vld [vmem:[%s325 + $0x290] sm:$0xff]
        %v501 = vld [vmem:[%s325 + $0x298] sm:$0xff]
        %v502 = vld [vmem:[%s325 + $0x2a0] sm:$0xff]
        %v503 = vld [vmem:[%s325 + $0x2a8] sm:$0xff]
        %v504 = vld [vmem:[%s325 + $0x2b0] sm:$0xff]
        %v505 = vld [vmem:[%s325 + $0x2b8] sm:$0xff]
        %v506 = vld [vmem:[%s325 + $0x2c0] sm:$0xff]
        %v507 = vld [vmem:[%s325 + $0x2c8] sm:$0xff]
        %v508 = vld [vmem:[%s325 + $0x2d0] sm:$0xff]
        %v509 = vld [vmem:[%s325 + $0x2d8] sm:$0xff]
        %v510 = vld [vmem:[%s325 + $0x2e0] sm:$0xff]
        %v511 = vld [vmem:[%s325 + $0x2e8] sm:$0xff]
        %v512 = vld [vmem:[%s325 + $0x2f0] sm:$0xff]
        %v513 = vld [vmem:[%s325 + $0x2f8] sm:$0xff]
        %v514 = vld [vmem:[%s325 + $0x300] sm:$0xff]
        %v515 = vld [vmem:[%s325 + $0x308] sm:$0xff]
        %v516 = vld [vmem:[%s325 + $0x310] sm:$0xff]
        %v517 = vld [vmem:[%s325 + $0x318] sm:$0xff]
        %v518 = vld [vmem:[%s325 + $0x320] sm:$0xff]
        %v519 = vld [vmem:[%s325 + $0x328] sm:$0xff]
        %v520 = vld [vmem:[%s325 + $0x330] sm:$0xff]
        %v521 = vld [vmem:[%s325 + $0x338] sm:$0xff]
        %v522 = vld [vmem:[%s325 + $0x340] sm:$0xff]
        %v523 = vld [vmem:[%s325 + $0x348] sm:$0xff]
        %v524 = vld [vmem:[%s325 + $0x350] sm:$0xff]
        %v525 = vld [vmem:[%s325 + $0x358] sm:$0xff]
        %v526 = vld [vmem:[%s325 + $0x360] sm:$0xff]
        %v527 = vld [vmem:[%s325 + $0x368] sm:$0xff]
        %v528 = vld [vmem:[%s325 + $0x370] sm:$0xff]
        %v529 = vld [vmem:[%s325 + $0x378] sm:$0xff]
        %v530 = vld [vmem:[%s325 + $0x380] sm:$0xff]
        %v531 = vld [vmem:[%s325 + $0x388] sm:$0xff]
        %v532 = vld [vmem:[%s325 + $0x390] sm:$0xff]
        %v533 = vld [vmem:[%s325 + $0x398] sm:$0xff]
        %v534 = vld [vmem:[%s325 + $0x3a0] sm:$0xff]
        %v535 = vld [vmem:[%s325 + $0x3a8] sm:$0xff]
        %v536 = vld [vmem:[%s325 + $0x3b0] sm:$0xff]
        %v537 = vld [vmem:[%s325 + $0x3b8] sm:$0xff]
        %v538 = vld [vmem:[%s325 + $0x3c0] sm:$0xff]
        %v539 = vld [vmem:[%s325 + $0x3c8] sm:$0xff]
        %v540 = vld [vmem:[%s325 + $0x3d0] sm:$0xff]
        %v541 = vld [vmem:[%s325 + $0x3d8] sm:$0xff]
        %v542 = vld [vmem:[%s325 + $0x3e0] sm:$0xff]
        %v543 = vld [vmem:[%s325 + $0x3e8] sm:$0xff]
        %v544 = vld [vmem:[%s325 + $0x3f0] sm:$0xff]
        %v545 = vld [vmem:[%s325 + $0x3f8] sm:$0xff]
        %v546 = vld [vmem:[%s325 + $0x400] sm:$0xff]
        %v547 = vld [vmem:[%s325 + $0x408] sm:$0xff]
        %v548 = vld [vmem:[%s325 + $0x410] sm:$0xff]
        %v549 = vld [vmem:[%s325 + $0x418] sm:$0xff]
        %v550 = vld [vmem:[%s325 + $0x420] sm:$0xff]
        %v551 = vld [vmem:[%s325 + $0x428] sm:$0xff]
        %v552 = vld [vmem:[%s325 + $0x430] sm:$0xff]
        %v553 = vld [vmem:[%s325 + $0x438] sm:$0xff]
        %v554 = vld [vmem:[%s325 + $0x440] sm:$0xff]
        %v555 = vld [vmem:[%s325 + $0x448] sm:$0xff]
        %v556 = vld [vmem:[%s325 + $0x450] sm:$0xff]
        %v557 = vld [vmem:[%s325 + $0x458] sm:$0xff]
        %v558 = vld [vmem:[%s325 + $0x460] sm:$0xff]
        %v559 = vld [vmem:[%s325 + $0x468] sm:$0xff]
        %v560 = vld [vmem:[%s325 + $0x470] sm:$0xff]
        %v561 = vld [vmem:[%s325 + $0x478] sm:$0xff]
        %v562 = vld [vmem:[%s325 + $0x480] sm:$0xff]
        %v563 = vld [vmem:[%s325 + $0x488] sm:$0xff]
        %v564 = vld [vmem:[%s325 + $0x490] sm:$0xff]
        %v565 = vld [vmem:[%s325 + $0x498] sm:$0xff]
        %v566 = vld [vmem:[%s325 + $0x4a0] sm:$0xff]
        %v567 = vld [vmem:[%s325 + $0x4a8] sm:$0xff]
        %v568 = vld [vmem:[%s325 + $0x4b0] sm:$0xff]
        %v569 = vld [vmem:[%s325 + $0x4b8] sm:$0xff]
        %v570 = vld [vmem:[%s325 + $0x4c0] sm:$0xff]
        %v571 = vld [vmem:[%s325 + $0x4c8] sm:$0xff]
        %v572 = vld [vmem:[%s325 + $0x4d0] sm:$0xff]
        %v573 = vld [vmem:[%s325 + $0x4d8] sm:$0xff]
        %v574 = vld [vmem:[%s325 + $0x4e0] sm:$0xff]
        %v575 = vld [vmem:[%s325 + $0x4e8] sm:$0xff]
        %v576 = vld [vmem:[%s325 + $0x4f0] sm:$0xff]
        %v577 = vld [vmem:[%s325 + $0x4f8] sm:$0xff]
        %v578 = vld [vmem:[%s325 + $0x500] sm:$0xff]
        %v579 = vld [vmem:[%s325 + $0x508] sm:$0xff]
        %v580 = vld [vmem:[%s325 + $0x510] sm:$0xff]
        %v581 = vld [vmem:[%s325 + $0x518] sm:$0xff]
        %v582 = vld [vmem:[%s325 + $0x520] sm:$0xff]
        %v583 = vld [vmem:[%s325 + $0x528] sm:$0xff]
        %v584 = vld [vmem:[%s325 + $0x530] sm:$0xff]
        %v585 = vld [vmem:[%s325 + $0x538] sm:$0xff]
        %v586 = vld [vmem:[%s325 + $0x540] sm:$0xff]
        %v587 = vld [vmem:[%s325 + $0x548] sm:$0xff]
        %v588 = vld [vmem:[%s325 + $0x550] sm:$0xff]
        %v589 = vld [vmem:[%s325 + $0x558] sm:$0xff]
        %v590 = vld [vmem:[%s325 + $0x560] sm:$0xff]
        %v591 = vld [vmem:[%s325 + $0x568] sm:$0xff]
        %v592 = vld [vmem:[%s325 + $0x570] sm:$0xff]
        %v593 = vld [vmem:[%s325 + $0x578] sm:$0xff]
        %v594 = vld [vmem:[%s325 + $0x580] sm:$0xff]
        %v595 = vld [vmem:[%s325 + $0x588] sm:$0xff]
        %v596 = vld [vmem:[%s325 + $0x590] sm:$0xff]
        %v597 = vld [vmem:[%s325 + $0x598] sm:$0xff]
        %v598 = vld [vmem:[%s325 + $0x5a0] sm:$0xff]
        %v599 = vld [vmem:[%s325 + $0x5a8] sm:$0xff]
        %v600 = vld [vmem:[%s325 + $0x5b0] sm:$0xff]
        %v601 = vld [vmem:[%s325 + $0x5b8] sm:$0xff]
        %v602 = vld [vmem:[%s325 + $0x5c0] sm:$0xff]
        %v603 = vld [vmem:[%s325 + $0x5c8] sm:$0xff]
        %v604 = vld [vmem:[%s325 + $0x5d0] sm:$0xff]
        %v605 = vld [vmem:[%s325 + $0x5d8] sm:$0xff]
        %v606 = vld [vmem:[%s325 + $0x5e0] sm:$0xff]
        %v607 = vld [vmem:[%s325 + $0x5e8] sm:$0xff]
        %v608 = vld [vmem:[%s325 + $0x5f0] sm:$0xff]
        %v609 = vld [vmem:[%s325 + $0x5f8] sm:$0xff]
        %v610 = vld [vmem:[%s325 + $0x600] sm:$0xff]
        %v611 = vld [vmem:[%s325 + $0x608] sm:$0xff]
        %v612 = vld [vmem:[%s325 + $0x610] sm:$0xff]
        %v613 = vld [vmem:[%s325 + $0x618] sm:$0xff]
        %v614 = vld [vmem:[%s325 + $0x620] sm:$0xff]
        %v615 = vld [vmem:[%s325 + $0x628] sm:$0xff]
        %v616 = vld [vmem:[%s325 + $0x630] sm:$0xff]
        %v617 = vld [vmem:[%s325 + $0x638] sm:$0xff]
        %v618 = vld [vmem:[%s325 + $0x640] sm:$0xff]
        %v619 = vld [vmem:[%s325 + $0x648] sm:$0xff]
        %v620 = vld [vmem:[%s325 + $0x650] sm:$0xff]
        %v621 = vld [vmem:[%s325 + $0x658] sm:$0xff]
        %v622 = vld [vmem:[%s325 + $0x660] sm:$0xff]
        %v623 = vld [vmem:[%s325 + $0x668] sm:$0xff]
        %v624 = vld [vmem:[%s325 + $0x670] sm:$0xff]
        %v625 = vld [vmem:[%s325 + $0x678] sm:$0xff]
        %v626 = vld [vmem:[%s325 + $0x680] sm:$0xff]
        %v627 = vld [vmem:[%s325 + $0x688] sm:$0xff]
        %v628 = vld [vmem:[%s325 + $0x690] sm:$0xff]
        %v629 = vld [vmem:[%s325 + $0x698] sm:$0xff]
        %v630 = vld [vmem:[%s325 + $0x6a0] sm:$0xff]
        %v631 = vld [vmem:[%s325 + $0x6a8] sm:$0xff]
        %v632 = vld [vmem:[%s325 + $0x6b0] sm:$0xff]
        %v633 = vld [vmem:[%s325 + $0x6b8] sm:$0xff]
        %v634 = vld [vmem:[%s325 + $0x6c0] sm:$0xff]
        %v635 = vld [vmem:[%s325 + $0x6c8] sm:$0xff]
        %v636 = vld [vmem:[%s325 + $0x6d0] sm:$0xff]
        %v637 = vld [vmem:[%s325 + $0x6d8] sm:$0xff]
        %v638 = vld [vmem:[%s325 + $0x6e0] sm:$0xff]
        %v639 = vld [vmem:[%s325 + $0x6e8] sm:$0xff]
        %v640 = vld [vmem:[%s325 + $0x6f0] sm:$0xff]
        %v641 = vld [vmem:[%s325 + $0x6f8] sm:$0xff]
        %v642 = vld [vmem:[%s325 + $0x700] sm:$0xff]
        %v643 = vld [vmem:[%s325 + $0x708] sm:$0xff]
        %v644 = vld [vmem:[%s325 + $0x710] sm:$0xff]
        %v645 = vld [vmem:[%s325 + $0x718] sm:$0xff]
        %v646 = vld [vmem:[%s325 + $0x720] sm:$0xff]
        %v647 = vld [vmem:[%s325 + $0x728] sm:$0xff]
        %v648 = vld [vmem:[%s325 + $0x730] sm:$0xff]
        %v649 = vld [vmem:[%s325 + $0x738] sm:$0xff]
        %v650 = vld [vmem:[%s325 + $0x740] sm:$0xff]
        %v651 = vld [vmem:[%s325 + $0x748] sm:$0xff]
        %v652 = vld [vmem:[%s325 + $0x750] sm:$0xff]
        %v653 = vld [vmem:[%s325 + $0x758] sm:$0xff]
        %v654 = vld [vmem:[%s325 + $0x760] sm:$0xff]
        %v655 = vld [vmem:[%s325 + $0x768] sm:$0xff]
        %v656 = vld [vmem:[%s325 + $0x770] sm:$0xff]
        %v657 = vld [vmem:[%s325 + $0x778] sm:$0xff]
        %v658 = vld [vmem:[%s334] sm:$0x3]
        %v660 = vlaneseq
        %v661 = vshrl.u32 %v660, 7
        %v662 = vsub.s32 0, %v661
        %v663 = vrot.slane %v658, %v662
        %v664 = vlaneseq
        %v665 = vshrl.u32 %v664, 7
        %v666 = vsub.s32 1, %v665
        %v667 = vrot.slane %v658, %v666
        %v686 = vunpack.c.l.b16 %v402
        %v687 = vunpack.c.h.b16 %v402
        %v688 = vunpack.c.l.b16 %v403
        %v689 = vunpack.c.h.b16 %v403
        %v690 = vunpack.c.l.b16 %v404
        %v691 = vunpack.c.h.b16 %v404
        %v692 = vunpack.c.l.b16 %v405
        %v693 = vunpack.c.h.b16 %v405
        %v694 = vunpack.c.l.b16 %v406
        %v695 = vunpack.c.h.b16 %v406
        %v696 = vunpack.c.l.b16 %v407
        %v697 = vunpack.c.h.b16 %v407
        %v698 = vunpack.c.l.b16 %v408
        %v699 = vunpack.c.h.b16 %v408
        %v700 = vunpack.c.l.b16 %v409
        %v701 = vunpack.c.l.b16 %v410
        %v702 = vunpack.c.h.b16 %v410
        %v703 = vunpack.c.l.b16 %v411
        %v704 = vunpack.c.h.b16 %v411
        %v705 = vunpack.c.l.b16 %v412
        %v706 = vunpack.c.h.b16 %v412
        %v707 = vunpack.c.l.b16 %v413
        %v708 = vunpack.c.h.b16 %v413
        %v709 = vunpack.c.l.b16 %v414
        %v710 = vunpack.c.h.b16 %v414
        %v711 = vunpack.c.l.b16 %v415
        %v712 = vunpack.c.h.b16 %v415
        %v713 = vunpack.c.l.b16 %v416
        %v714 = vunpack.c.h.b16 %v416
        %v715 = vunpack.c.l.b16 %v417
        %v716 = vpack.c.b16 %v701, %v686
        %v717 = vpack.c.b16 %v702, %v687
        %v718 = vpack.c.b16 %v703, %v688
        %v719 = vpack.c.b16 %v704, %v689
        %v720 = vpack.c.b16 %v705, %v690
        %v721 = vpack.c.b16 %v706, %v691
        %v722 = vpack.c.b16 %v707, %v692
        %v723 = vpack.c.b16 %v708, %v693
        %v724 = vpack.c.b16 %v709, %v694
        %v725 = vpack.c.b16 %v710, %v695
        %v726 = vpack.c.b16 %v711, %v696
        %v727 = vpack.c.b16 %v712, %v697
        %v728 = vpack.c.b16 %v713, %v698
        %v729 = vpack.c.b16 %v714, %v699
        %v730 = vpack.c.b16 %v715, %v700
        %v986 = vunpack.c.l.b16 %v418
        %v987 = vunpack.c.h.b16 %v418
        %v988 = vunpack.c.l.b16 %v419
        %v989 = vunpack.c.h.b16 %v419
        %v990 = vunpack.c.l.b16 %v420
        %v991 = vunpack.c.h.b16 %v420
        %v992 = vunpack.c.l.b16 %v421
        %v993 = vunpack.c.h.b16 %v421
        %v994 = vunpack.c.l.b16 %v422
        %v995 = vunpack.c.h.b16 %v422
        %v996 = vunpack.c.l.b16 %v423
        %v997 = vunpack.c.h.b16 %v423
        %v998 = vunpack.c.l.b16 %v424
        %v999 = vunpack.c.h.b16 %v424
        %v1000 = vunpack.c.l.b16 %v425
        %v1001 = vunpack.c.h.b16 %v425
        %v1002 = vunpack.c.l.b16 %v426
        %v1003 = vunpack.c.h.b16 %v426
        %v1004 = vunpack.c.l.b16 %v427
        %v1005 = vunpack.c.h.b16 %v427
        %v1006 = vunpack.c.l.b16 %v428
        %v1007 = vunpack.c.h.b16 %v428
        %v1008 = vunpack.c.l.b16 %v429
        %v1009 = vunpack.c.h.b16 %v429
        %v1010 = vunpack.c.l.b16 %v430
        %v1011 = vunpack.c.h.b16 %v430
        %v1012 = vunpack.c.l.b16 %v431
        %v1013 = vunpack.c.h.b16 %v431
        %v1014 = vunpack.c.l.b16 %v432
        %v1015 = vunpack.c.h.b16 %v432
        %v1016 = vunpack.c.l.b16 %v433
        %v1017 = vunpack.c.h.b16 %v433
        %v1018 = vunpack.c.l.b16 %v434
        %v1019 = vunpack.c.h.b16 %v434
        %v1020 = vunpack.c.l.b16 %v435
        %v1021 = vunpack.c.h.b16 %v435
        %v1022 = vunpack.c.l.b16 %v436
        %v1023 = vunpack.c.h.b16 %v436
        %v1024 = vunpack.c.l.b16 %v437
        %v1025 = vunpack.c.h.b16 %v437
        %v1026 = vunpack.c.l.b16 %v438
        %v1027 = vunpack.c.h.b16 %v438
        %v1028 = vunpack.c.l.b16 %v439
        %v1029 = vunpack.c.h.b16 %v439
        %v1030 = vunpack.c.l.b16 %v440
        %v1031 = vunpack.c.h.b16 %v440
        %v1032 = vunpack.c.l.b16 %v441
        %v1033 = vunpack.c.h.b16 %v441
        %v1034 = vunpack.c.l.b16 %v442
        %v1035 = vunpack.c.h.b16 %v442
        %v1036 = vunpack.c.l.b16 %v443
        %v1037 = vunpack.c.h.b16 %v443
        %v1038 = vunpack.c.l.b16 %v444
        %v1039 = vunpack.c.h.b16 %v444
        %v1040 = vunpack.c.l.b16 %v445
        %v1041 = vunpack.c.h.b16 %v445
        %v1042 = vunpack.c.l.b16 %v446
        %v1043 = vunpack.c.h.b16 %v446
        %v1044 = vunpack.c.l.b16 %v447
        %v1045 = vunpack.c.h.b16 %v447
        %v1046 = vunpack.c.l.b16 %v448
        %v1047 = vunpack.c.h.b16 %v448
        %v1048 = vunpack.c.l.b16 %v449
        %v1049 = vunpack.c.h.b16 %v449
        %v1050 = vunpack.c.l.b16 %v450
        %v1051 = vunpack.c.h.b16 %v450
        %v1052 = vunpack.c.l.b16 %v451
        %v1053 = vunpack.c.h.b16 %v451
        %v1054 = vunpack.c.l.b16 %v452
        %v1055 = vunpack.c.h.b16 %v452
        %v1056 = vunpack.c.l.b16 %v453
        %v1057 = vunpack.c.h.b16 %v453
        %v1058 = vunpack.c.l.b16 %v454
        %v1059 = vunpack.c.h.b16 %v454
        %v1060 = vunpack.c.l.b16 %v455
        %v1061 = vunpack.c.h.b16 %v455
        %v1062 = vunpack.c.l.b16 %v456
        %v1063 = vunpack.c.h.b16 %v456
        %v1064 = vunpack.c.l.b16 %v457
        %v1065 = vunpack.c.h.b16 %v457
        %v1066 = vunpack.c.l.b16 %v458
        %v1067 = vunpack.c.h.b16 %v458
        %v1068 = vunpack.c.l.b16 %v459
        %v1069 = vunpack.c.h.b16 %v459
        %v1070 = vunpack.c.l.b16 %v460
        %v1071 = vunpack.c.h.b16 %v460
        %v1072 = vunpack.c.l.b16 %v461
        %v1073 = vunpack.c.h.b16 %v461
        %v1074 = vunpack.c.l.b16 %v462
        %v1075 = vunpack.c.h.b16 %v462
        %v1076 = vunpack.c.l.b16 %v463
        %v1077 = vunpack.c.h.b16 %v463
        %v1078 = vunpack.c.l.b16 %v464
        %v1079 = vunpack.c.h.b16 %v464
        %v1080 = vunpack.c.l.b16 %v465
        %v1081 = vunpack.c.h.b16 %v465
        %v1082 = vunpack.c.l.b16 %v466
        %v1083 = vunpack.c.h.b16 %v466
        %v1084 = vunpack.c.l.b16 %v467
        %v1085 = vunpack.c.h.b16 %v467
        %v1086 = vunpack.c.l.b16 %v468
        %v1087 = vunpack.c.h.b16 %v468
        %v1088 = vunpack.c.l.b16 %v469
        %v1089 = vunpack.c.h.b16 %v469
        %v1090 = vunpack.c.l.b16 %v470
        %v1091 = vunpack.c.h.b16 %v470
        %v1092 = vunpack.c.l.b16 %v471
        %v1093 = vunpack.c.h.b16 %v471
        %v1094 = vunpack.c.l.b16 %v472
        %v1095 = vunpack.c.h.b16 %v472
        %v1096 = vunpack.c.l.b16 %v473
        %v1097 = vunpack.c.h.b16 %v473
        %v1098 = vunpack.c.l.b16 %v474
        %v1099 = vunpack.c.h.b16 %v474
        %v1100 = vunpack.c.l.b16 %v475
        %v1101 = vunpack.c.h.b16 %v475
        %v1102 = vunpack.c.l.b16 %v476
        %v1103 = vunpack.c.h.b16 %v476
        %v1104 = vunpack.c.l.b16 %v477
        %v1105 = vunpack.c.h.b16 %v477
        %v1106 = vunpack.c.l.b16 %v478
        %v1107 = vunpack.c.h.b16 %v478
        %v1108 = vunpack.c.l.b16 %v479
        %v1109 = vunpack.c.h.b16 %v479
        %v1110 = vunpack.c.l.b16 %v480
        %v1111 = vunpack.c.h.b16 %v480
        %v1112 = vunpack.c.l.b16 %v481
        %v1113 = vunpack.c.h.b16 %v481
        %v1114 = vunpack.c.l.b16 %v482
        %v1115 = vunpack.c.h.b16 %v482
        %v1116 = vunpack.c.l.b16 %v483
        %v1117 = vunpack.c.h.b16 %v483
        %v1118 = vunpack.c.l.b16 %v484
        %v1119 = vunpack.c.h.b16 %v484
        %v1120 = vunpack.c.l.b16 %v485
        %v1121 = vunpack.c.h.b16 %v485
        %v1122 = vunpack.c.l.b16 %v486
        %v1123 = vunpack.c.h.b16 %v486
        %v1124 = vunpack.c.l.b16 %v487
        %v1125 = vunpack.c.h.b16 %v487
        %v1126 = vunpack.c.l.b16 %v488
        %v1127 = vunpack.c.h.b16 %v488
        %v1128 = vunpack.c.l.b16 %v489
        %v1129 = vunpack.c.h.b16 %v489
        %v1130 = vunpack.c.l.b16 %v490
        %v1131 = vunpack.c.h.b16 %v490
        %v1132 = vunpack.c.l.b16 %v491
        %v1133 = vunpack.c.h.b16 %v491
        %v1134 = vunpack.c.l.b16 %v492
        %v1135 = vunpack.c.h.b16 %v492
        %v1136 = vunpack.c.l.b16 %v493
        %v1137 = vunpack.c.h.b16 %v493
        %v1138 = vunpack.c.l.b16 %v494
        %v1139 = vunpack.c.h.b16 %v494
        %v1140 = vunpack.c.l.b16 %v495
        %v1141 = vunpack.c.h.b16 %v495
        %v1142 = vunpack.c.l.b16 %v496
        %v1143 = vunpack.c.h.b16 %v496
        %v1144 = vunpack.c.l.b16 %v497
        %v1145 = vunpack.c.h.b16 %v497
        %v1146 = vunpack.c.l.b16 %v498
        %v1147 = vunpack.c.h.b16 %v498
        %v1148 = vunpack.c.l.b16 %v499
        %v1149 = vunpack.c.h.b16 %v499
        %v1150 = vunpack.c.l.b16 %v500
        %v1151 = vunpack.c.h.b16 %v500
        %v1152 = vunpack.c.l.b16 %v501
        %v1153 = vunpack.c.h.b16 %v501
        %v1154 = vunpack.c.l.b16 %v502
        %v1155 = vunpack.c.h.b16 %v502
        %v1156 = vunpack.c.l.b16 %v503
        %v1157 = vunpack.c.h.b16 %v503
        %v1158 = vunpack.c.l.b16 %v504
        %v1159 = vunpack.c.h.b16 %v504
        %v1160 = vunpack.c.l.b16 %v505
        %v1161 = vunpack.c.h.b16 %v505
        %v1162 = vunpack.c.l.b16 %v506
        %v1163 = vunpack.c.h.b16 %v506
        %v1164 = vunpack.c.l.b16 %v507
        %v1165 = vunpack.c.h.b16 %v507
        %v1166 = vunpack.c.l.b16 %v508
        %v1167 = vunpack.c.h.b16 %v508
        %v1168 = vunpack.c.l.b16 %v509
        %v1169 = vunpack.c.h.b16 %v509
        %v1170 = vunpack.c.l.b16 %v510
        %v1171 = vunpack.c.h.b16 %v510
        %v1172 = vunpack.c.l.b16 %v511
        %v1173 = vunpack.c.h.b16 %v511
        %v1174 = vunpack.c.l.b16 %v512
        %v1175 = vunpack.c.h.b16 %v512
        %v1176 = vunpack.c.l.b16 %v513
        %v1177 = vunpack.c.h.b16 %v513
        %v1178 = vunpack.c.l.b16 %v514
        %v1179 = vunpack.c.h.b16 %v514
        %v1180 = vunpack.c.l.b16 %v515
        %v1181 = vunpack.c.h.b16 %v515
        %v1182 = vunpack.c.l.b16 %v516
        %v1183 = vunpack.c.h.b16 %v516
        %v1184 = vunpack.c.l.b16 %v517
        %v1185 = vunpack.c.h.b16 %v517
        %v1186 = vunpack.c.l.b16 %v518
        %v1187 = vunpack.c.h.b16 %v518
        %v1188 = vunpack.c.l.b16 %v519
        %v1189 = vunpack.c.h.b16 %v519
        %v1190 = vunpack.c.l.b16 %v520
        %v1191 = vunpack.c.h.b16 %v520
        %v1192 = vunpack.c.l.b16 %v521
        %v1193 = vunpack.c.h.b16 %v521
        %v1194 = vunpack.c.l.b16 %v522
        %v1195 = vunpack.c.h.b16 %v522
        %v1196 = vunpack.c.l.b16 %v523
        %v1197 = vunpack.c.h.b16 %v523
        %v1198 = vunpack.c.l.b16 %v524
        %v1199 = vunpack.c.h.b16 %v524
        %v1200 = vunpack.c.l.b16 %v525
        %v1201 = vunpack.c.h.b16 %v525
        %v1202 = vunpack.c.l.b16 %v526
        %v1203 = vunpack.c.h.b16 %v526
        %v1204 = vunpack.c.l.b16 %v527
        %v1205 = vunpack.c.h.b16 %v527
        %v1206 = vunpack.c.l.b16 %v528
        %v1207 = vunpack.c.h.b16 %v528
        %v1208 = vunpack.c.l.b16 %v529
        %v1209 = vunpack.c.h.b16 %v529
        %v1210 = vunpack.c.l.b16 %v530
        %v1211 = vunpack.c.h.b16 %v530
        %v1212 = vunpack.c.l.b16 %v531
        %v1213 = vunpack.c.h.b16 %v531
        %v1214 = vunpack.c.l.b16 %v532
        %v1215 = vunpack.c.h.b16 %v532
        %v1216 = vunpack.c.l.b16 %v533
        %v1217 = vunpack.c.h.b16 %v533
        %v1218 = vunpack.c.l.b16 %v534
        %v1219 = vunpack.c.h.b16 %v534
        %v1220 = vunpack.c.l.b16 %v535
        %v1221 = vunpack.c.h.b16 %v535
        %v1222 = vunpack.c.l.b16 %v536
        %v1223 = vunpack.c.h.b16 %v536
        %v1224 = vunpack.c.l.b16 %v537
        %v1225 = vunpack.c.h.b16 %v537
        %v1226 = vunpack.c.l.b16 %v538
        %v1227 = vunpack.c.h.b16 %v538
        %v1228 = vunpack.c.l.b16 %v539
        %v1229 = vunpack.c.h.b16 %v539
        %v1230 = vunpack.c.l.b16 %v540
        %v1231 = vunpack.c.h.b16 %v540
        %v1232 = vunpack.c.l.b16 %v541
        %v1233 = vunpack.c.h.b16 %v541
        %v1234 = vunpack.c.l.b16 %v542
        %v1235 = vunpack.c.h.b16 %v542
        %v1236 = vunpack.c.l.b16 %v543
        %v1237 = vunpack.c.h.b16 %v543
        %v1238 = vunpack.c.l.b16 %v544
        %v1239 = vunpack.c.h.b16 %v544
        %v1240 = vunpack.c.l.b16 %v545
        %v1241 = vunpack.c.h.b16 %v545
        %v1242 = vunpack.c.l.b16 %v546
        %v1243 = vunpack.c.h.b16 %v546
        %v1244 = vunpack.c.l.b16 %v547
        %v1245 = vunpack.c.h.b16 %v547
        %v1246 = vunpack.c.l.b16 %v548
        %v1247 = vunpack.c.h.b16 %v548
        %v1248 = vunpack.c.l.b16 %v549
        %v1249 = vunpack.c.h.b16 %v549
        %v1250 = vunpack.c.l.b16 %v550
        %v1251 = vunpack.c.h.b16 %v550
        %v1252 = vunpack.c.l.b16 %v551
        %v1253 = vunpack.c.h.b16 %v551
        %v1254 = vunpack.c.l.b16 %v552
        %v1255 = vunpack.c.h.b16 %v552
        %v1256 = vunpack.c.l.b16 %v553
        %v1257 = vunpack.c.h.b16 %v553
        %v1258 = vunpack.c.l.b16 %v554
        %v1259 = vunpack.c.h.b16 %v554
        %v1260 = vunpack.c.l.b16 %v555
        %v1261 = vunpack.c.h.b16 %v555
        %v1262 = vunpack.c.l.b16 %v556
        %v1263 = vunpack.c.h.b16 %v556
        %v1264 = vunpack.c.l.b16 %v557
        %v1265 = vunpack.c.h.b16 %v557
        %v1266 = vunpack.c.l.b16 %v558
        %v1267 = vunpack.c.h.b16 %v558
        %v1268 = vunpack.c.l.b16 %v559
        %v1269 = vunpack.c.h.b16 %v559
        %v1270 = vunpack.c.l.b16 %v560
        %v1271 = vunpack.c.h.b16 %v560
        %v1272 = vunpack.c.l.b16 %v561
        %v1273 = vunpack.c.h.b16 %v561
        %v1274 = vunpack.c.l.b16 %v562
        %v1275 = vunpack.c.h.b16 %v562
        %v1276 = vunpack.c.l.b16 %v563
        %v1277 = vunpack.c.h.b16 %v563
        %v1278 = vunpack.c.l.b16 %v564
        %v1279 = vunpack.c.h.b16 %v564
        %v1280 = vunpack.c.l.b16 %v565
        %v1281 = vunpack.c.h.b16 %v565
        %v1282 = vunpack.c.l.b16 %v566
        %v1283 = vunpack.c.h.b16 %v566
        %v1284 = vunpack.c.l.b16 %v567
        %v1285 = vunpack.c.h.b16 %v567
        %v1286 = vunpack.c.l.b16 %v568
        %v1287 = vunpack.c.h.b16 %v568
        %v1288 = vunpack.c.l.b16 %v569
        %v1289 = vunpack.c.h.b16 %v569
        %v1290 = vunpack.c.l.b16 %v570
        %v1291 = vunpack.c.h.b16 %v570
        %v1292 = vunpack.c.l.b16 %v571
        %v1293 = vunpack.c.h.b16 %v571
        %v1294 = vunpack.c.l.b16 %v572
        %v1295 = vunpack.c.h.b16 %v572
        %v1296 = vunpack.c.l.b16 %v573
        %v1297 = vunpack.c.h.b16 %v573
        %v1298 = vunpack.c.l.b16 %v574
        %v1299 = vunpack.c.h.b16 %v574
        %v1300 = vunpack.c.l.b16 %v575
        %v1301 = vunpack.c.h.b16 %v575
        %v1302 = vunpack.c.l.b16 %v576
        %v1303 = vunpack.c.h.b16 %v576
        %v1304 = vunpack.c.l.b16 %v577
        %v1305 = vunpack.c.h.b16 %v577
        %v1306 = vunpack.c.l.b16 %v578
        %v1307 = vunpack.c.h.b16 %v578
        %v1308 = vunpack.c.l.b16 %v579
        %v1309 = vunpack.c.h.b16 %v579
        %v1310 = vunpack.c.l.b16 %v580
        %v1311 = vunpack.c.h.b16 %v580
        %v1312 = vunpack.c.l.b16 %v581
        %v1313 = vunpack.c.h.b16 %v581
        %v1314 = vunpack.c.l.b16 %v582
        %v1315 = vunpack.c.h.b16 %v582
        %v1316 = vunpack.c.l.b16 %v583
        %v1317 = vunpack.c.h.b16 %v583
        %v1318 = vunpack.c.l.b16 %v584
        %v1319 = vunpack.c.h.b16 %v584
        %v1320 = vunpack.c.l.b16 %v585
        %v1321 = vunpack.c.h.b16 %v585
        %v1322 = vunpack.c.l.b16 %v586
        %v1323 = vunpack.c.h.b16 %v586
        %v1324 = vunpack.c.l.b16 %v587
        %v1325 = vunpack.c.h.b16 %v587
        %v1326 = vunpack.c.l.b16 %v588
        %v1327 = vunpack.c.h.b16 %v588
        %v1328 = vunpack.c.l.b16 %v589
        %v1329 = vunpack.c.h.b16 %v589
        %v1330 = vunpack.c.l.b16 %v590
        %v1331 = vunpack.c.h.b16 %v590
        %v1332 = vunpack.c.l.b16 %v591
        %v1333 = vunpack.c.h.b16 %v591
        %v1334 = vunpack.c.l.b16 %v592
        %v1335 = vunpack.c.h.b16 %v592
        %v1336 = vunpack.c.l.b16 %v593
        %v1337 = vunpack.c.h.b16 %v593
        %v1338 = vunpack.c.l.b16 %v594
        %v1339 = vunpack.c.h.b16 %v594
        %v1340 = vunpack.c.l.b16 %v595
        %v1341 = vunpack.c.h.b16 %v595
        %v1342 = vunpack.c.l.b16 %v596
        %v1343 = vunpack.c.h.b16 %v596
        %v1344 = vunpack.c.l.b16 %v597
        %v1345 = vunpack.c.h.b16 %v597
        %v1346 = vunpack.c.l.b16 %v598
        %v1347 = vunpack.c.h.b16 %v598
        %v1348 = vunpack.c.l.b16 %v599
        %v1349 = vunpack.c.h.b16 %v599
        %v1350 = vunpack.c.l.b16 %v600
        %v1351 = vunpack.c.h.b16 %v600
        %v1352 = vunpack.c.l.b16 %v601
        %v1353 = vunpack.c.h.b16 %v601
        %v1354 = vunpack.c.l.b16 %v602
        %v1355 = vunpack.c.h.b16 %v602
        %v1356 = vunpack.c.l.b16 %v603
        %v1357 = vunpack.c.h.b16 %v603
        %v1358 = vunpack.c.l.b16 %v604
        %v1359 = vunpack.c.h.b16 %v604
        %v1360 = vunpack.c.l.b16 %v605
        %v1361 = vunpack.c.h.b16 %v605
        %v1362 = vunpack.c.l.b16 %v606
        %v1363 = vunpack.c.h.b16 %v606
        %v1364 = vunpack.c.l.b16 %v607
        %v1365 = vunpack.c.h.b16 %v607
        %v1366 = vunpack.c.l.b16 %v608
        %v1367 = vunpack.c.h.b16 %v608
        %v1368 = vunpack.c.l.b16 %v609
        %v1369 = vunpack.c.h.b16 %v609
        %v1370 = vunpack.c.l.b16 %v610
        %v1371 = vunpack.c.h.b16 %v610
        %v1372 = vunpack.c.l.b16 %v611
        %v1373 = vunpack.c.h.b16 %v611
        %v1374 = vunpack.c.l.b16 %v612
        %v1375 = vunpack.c.h.b16 %v612
        %v1376 = vunpack.c.l.b16 %v613
        %v1377 = vunpack.c.h.b16 %v613
        %v1378 = vunpack.c.l.b16 %v614
        %v1379 = vunpack.c.h.b16 %v614
        %v1380 = vunpack.c.l.b16 %v615
        %v1381 = vunpack.c.h.b16 %v615
        %v1382 = vunpack.c.l.b16 %v616
        %v1383 = vunpack.c.h.b16 %v616
        %v1384 = vunpack.c.l.b16 %v617
        %v1385 = vunpack.c.h.b16 %v617
        %v1386 = vunpack.c.l.b16 %v618
        %v1387 = vunpack.c.h.b16 %v618
        %v1388 = vunpack.c.l.b16 %v619
        %v1389 = vunpack.c.h.b16 %v619
        %v1390 = vunpack.c.l.b16 %v620
        %v1391 = vunpack.c.h.b16 %v620
        %v1392 = vunpack.c.l.b16 %v621
        %v1393 = vunpack.c.h.b16 %v621
        %v1394 = vunpack.c.l.b16 %v622
        %v1395 = vunpack.c.h.b16 %v622
        %v1396 = vunpack.c.l.b16 %v623
        %v1397 = vunpack.c.h.b16 %v623
        %v1398 = vunpack.c.l.b16 %v624
        %v1399 = vunpack.c.h.b16 %v624
        %v1400 = vunpack.c.l.b16 %v625
        %v1401 = vunpack.c.h.b16 %v625
        %v1402 = vunpack.c.l.b16 %v626
        %v1403 = vunpack.c.h.b16 %v626
        %v1404 = vunpack.c.l.b16 %v627
        %v1405 = vunpack.c.h.b16 %v627
        %v1406 = vunpack.c.l.b16 %v628
        %v1407 = vunpack.c.h.b16 %v628
        %v1408 = vunpack.c.l.b16 %v629
        %v1409 = vunpack.c.h.b16 %v629
        %v1410 = vunpack.c.l.b16 %v630
        %v1411 = vunpack.c.h.b16 %v630
        %v1412 = vunpack.c.l.b16 %v631
        %v1413 = vunpack.c.h.b16 %v631
        %v1414 = vunpack.c.l.b16 %v632
        %v1415 = vunpack.c.h.b16 %v632
        %v1416 = vunpack.c.l.b16 %v633
        %v1417 = vunpack.c.h.b16 %v633
        %v1418 = vunpack.c.l.b16 %v634
        %v1419 = vunpack.c.h.b16 %v634
        %v1420 = vunpack.c.l.b16 %v635
        %v1421 = vunpack.c.h.b16 %v635
        %v1422 = vunpack.c.l.b16 %v636
        %v1423 = vunpack.c.h.b16 %v636
        %v1424 = vunpack.c.l.b16 %v637
        %v1425 = vunpack.c.h.b16 %v637
        %v1426 = vunpack.c.l.b16 %v638
        %v1427 = vunpack.c.h.b16 %v638
        %v1428 = vunpack.c.l.b16 %v639
        %v1429 = vunpack.c.h.b16 %v639
        %v1430 = vunpack.c.l.b16 %v640
        %v1431 = vunpack.c.h.b16 %v640
        %v1432 = vunpack.c.l.b16 %v641
        %v1433 = vunpack.c.h.b16 %v641
        %v1434 = vunpack.c.l.b16 %v642
        %v1435 = vunpack.c.h.b16 %v642
        %v1436 = vunpack.c.l.b16 %v643
        %v1437 = vunpack.c.h.b16 %v643
        %v1438 = vunpack.c.l.b16 %v644
        %v1439 = vunpack.c.h.b16 %v644
        %v1440 = vunpack.c.l.b16 %v645
        %v1441 = vunpack.c.h.b16 %v645
        %v1442 = vunpack.c.l.b16 %v646
        %v1443 = vunpack.c.h.b16 %v646
        %v1444 = vunpack.c.l.b16 %v647
        %v1445 = vunpack.c.h.b16 %v647
        %v1446 = vunpack.c.l.b16 %v648
        %v1447 = vunpack.c.h.b16 %v648
        %v1448 = vunpack.c.l.b16 %v649
        %v1449 = vunpack.c.h.b16 %v649
        %v1450 = vunpack.c.l.b16 %v650
        %v1451 = vunpack.c.h.b16 %v650
        %v1452 = vunpack.c.l.b16 %v651
        %v1453 = vunpack.c.h.b16 %v651
        %v1454 = vunpack.c.l.b16 %v652
        %v1455 = vunpack.c.h.b16 %v652
        %v1456 = vunpack.c.l.b16 %v653
        %v1457 = vunpack.c.h.b16 %v653
        %v1458 = vunpack.c.l.b16 %v654
        %v1459 = vunpack.c.h.b16 %v654
        %v1460 = vunpack.c.l.b16 %v655
        %v1461 = vunpack.c.h.b16 %v655
        %v1462 = vunpack.c.l.b16 %v656
        %v1463 = vunpack.c.h.b16 %v656
        %v1464 = vunpack.c.l.b16 %v657
        %v1465 = vunpack.c.h.b16 %v657
        %v1466 = vpack.c.b16 %v988, %v986
        %v1467 = vpack.c.b16 %v989, %v987
        %v1468 = vpack.c.b16 %v992, %v990
        %v1469 = vpack.c.b16 %v993, %v991
        %v1470 = vpack.c.b16 %v996, %v994
        %v1471 = vpack.c.b16 %v997, %v995
        %v1472 = vpack.c.b16 %v1000, %v998
        %v1473 = vpack.c.b16 %v1001, %v999
        %v1474 = vpack.c.b16 %v1004, %v1002
        %v1475 = vpack.c.b16 %v1005, %v1003
        %v1476 = vpack.c.b16 %v1008, %v1006
        %v1477 = vpack.c.b16 %v1009, %v1007
        %v1478 = vpack.c.b16 %v1012, %v1010
        %v1479 = vpack.c.b16 %v1013, %v1011
        %v1480 = vpack.c.b16 %v1016, %v1014
        %v1481 = vpack.c.b16 %v1017, %v1015
        %v1482 = vpack.c.b16 %v1020, %v1018
        %v1483 = vpack.c.b16 %v1021, %v1019
        %v1484 = vpack.c.b16 %v1024, %v1022
        %v1485 = vpack.c.b16 %v1025, %v1023
        %v1486 = vpack.c.b16 %v1028, %v1026
        %v1487 = vpack.c.b16 %v1029, %v1027
        %v1488 = vpack.c.b16 %v1032, %v1030
        %v1489 = vpack.c.b16 %v1033, %v1031
        %v1490 = vpack.c.b16 %v1036, %v1034
        %v1491 = vpack.c.b16 %v1037, %v1035
        %v1492 = vpack.c.b16 %v1040, %v1038
        %v1493 = vpack.c.b16 %v1041, %v1039
        %v1494 = vpack.c.b16 %v1044, %v1042
        %v1495 = vpack.c.b16 %v1045, %v1043
        %v1496 = vpack.c.b16 %v1048, %v1046
        %v1497 = vpack.c.b16 %v1049, %v1047
        %v1498 = vpack.c.b16 %v1052, %v1050
        %v1499 = vpack.c.b16 %v1053, %v1051
        %v1500 = vpack.c.b16 %v1056, %v1054
        %v1501 = vpack.c.b16 %v1057, %v1055
        %v1502 = vpack.c.b16 %v1060, %v1058
        %v1503 = vpack.c.b16 %v1061, %v1059
        %v1504 = vpack.c.b16 %v1064, %v1062
        %v1505 = vpack.c.b16 %v1065, %v1063
        %v1506 = vpack.c.b16 %v1068, %v1066
        %v1507 = vpack.c.b16 %v1069, %v1067
        %v1508 = vpack.c.b16 %v1072, %v1070
        %v1509 = vpack.c.b16 %v1073, %v1071
        %v1510 = vpack.c.b16 %v1076, %v1074
        %v1511 = vpack.c.b16 %v1077, %v1075
        %v1512 = vpack.c.b16 %v1080, %v1078
        %v1513 = vpack.c.b16 %v1081, %v1079
        %v1514 = vpack.c.b16 %v1084, %v1082
        %v1515 = vpack.c.b16 %v1085, %v1083
        %v1516 = vpack.c.b16 %v1088, %v1086
        %v1517 = vpack.c.b16 %v1089, %v1087
        %v1518 = vpack.c.b16 %v1092, %v1090
        %v1519 = vpack.c.b16 %v1093, %v1091
        %v1520 = vpack.c.b16 %v1096, %v1094
        %v1521 = vpack.c.b16 %v1097, %v1095
        %v1522 = vpack.c.b16 %v1100, %v1098
        %v1523 = vpack.c.b16 %v1101, %v1099
        %v1524 = vpack.c.b16 %v1104, %v1102
        %v1525 = vpack.c.b16 %v1105, %v1103
        %v1526 = vpack.c.b16 %v1108, %v1106
        %v1527 = vpack.c.b16 %v1109, %v1107
        %v1528 = vpack.c.b16 %v1112, %v1110
        %v1529 = vpack.c.b16 %v1113, %v1111
        %v1530 = vpack.c.b16 %v1116, %v1114
        %v1531 = vpack.c.b16 %v1117, %v1115
        %v1532 = vpack.c.b16 %v1120, %v1118
        %v1533 = vpack.c.b16 %v1121, %v1119
        %v1534 = vpack.c.b16 %v1124, %v1122
        %v1535 = vpack.c.b16 %v1125, %v1123
        %v1536 = vpack.c.b16 %v1128, %v1126
        %v1537 = vpack.c.b16 %v1129, %v1127
        %v1538 = vpack.c.b16 %v1132, %v1130
        %v1539 = vpack.c.b16 %v1133, %v1131
        %v1540 = vpack.c.b16 %v1136, %v1134
        %v1541 = vpack.c.b16 %v1137, %v1135
        %v1542 = vpack.c.b16 %v1140, %v1138
        %v1543 = vpack.c.b16 %v1141, %v1139
        %v1544 = vpack.c.b16 %v1144, %v1142
        %v1545 = vpack.c.b16 %v1145, %v1143
        %v1546 = vpack.c.b16 %v1148, %v1146
        %v1547 = vpack.c.b16 %v1149, %v1147
        %v1548 = vpack.c.b16 %v1152, %v1150
        %v1549 = vpack.c.b16 %v1153, %v1151
        %v1550 = vpack.c.b16 %v1156, %v1154
        %v1551 = vpack.c.b16 %v1157, %v1155
        %v1552 = vpack.c.b16 %v1160, %v1158
        %v1553 = vpack.c.b16 %v1161, %v1159
        %v1554 = vpack.c.b16 %v1164, %v1162
        %v1555 = vpack.c.b16 %v1165, %v1163
        %v1556 = vpack.c.b16 %v1168, %v1166
        %v1557 = vpack.c.b16 %v1169, %v1167
        %v1558 = vpack.c.b16 %v1172, %v1170
        %v1559 = vpack.c.b16 %v1173, %v1171
        %v1560 = vpack.c.b16 %v1176, %v1174
        %v1561 = vpack.c.b16 %v1177, %v1175
        %v1562 = vpack.c.b16 %v1180, %v1178
        %v1563 = vpack.c.b16 %v1181, %v1179
        %v1564 = vpack.c.b16 %v1184, %v1182
        %v1565 = vpack.c.b16 %v1185, %v1183
        %v1566 = vpack.c.b16 %v1188, %v1186
        %v1567 = vpack.c.b16 %v1189, %v1187
        %v1568 = vpack.c.b16 %v1192, %v1190
        %v1569 = vpack.c.b16 %v1193, %v1191
        %v1570 = vpack.c.b16 %v1196, %v1194
        %v1571 = vpack.c.b16 %v1197, %v1195
        %v1572 = vpack.c.b16 %v1200, %v1198
        %v1573 = vpack.c.b16 %v1201, %v1199
        %v1574 = vpack.c.b16 %v1204, %v1202
        %v1575 = vpack.c.b16 %v1205, %v1203
        %v1576 = vpack.c.b16 %v1208, %v1206
        %v1577 = vpack.c.b16 %v1209, %v1207
        %v1578 = vpack.c.b16 %v1212, %v1210
        %v1579 = vpack.c.b16 %v1213, %v1211
        %v1580 = vpack.c.b16 %v1216, %v1214
        %v1581 = vpack.c.b16 %v1217, %v1215
        %v1582 = vpack.c.b16 %v1220, %v1218
        %v1583 = vpack.c.b16 %v1221, %v1219
        %v1584 = vpack.c.b16 %v1224, %v1222
        %v1585 = vpack.c.b16 %v1225, %v1223
        %v1586 = vpack.c.b16 %v1228, %v1226
        %v1587 = vpack.c.b16 %v1229, %v1227
        %v1588 = vpack.c.b16 %v1232, %v1230
        %v1589 = vpack.c.b16 %v1233, %v1231
        %v1590 = vpack.c.b16 %v1236, %v1234
        %v1591 = vpack.c.b16 %v1237, %v1235
        %v1592 = vpack.c.b16 %v1240, %v1238
        %v1593 = vpack.c.b16 %v1241, %v1239
        %v1594 = vpack.c.b16 %v1244, %v1242
        %v1595 = vpack.c.b16 %v1245, %v1243
        %v1596 = vpack.c.b16 %v1248, %v1246
        %v1597 = vpack.c.b16 %v1249, %v1247
        %v1598 = vpack.c.b16 %v1252, %v1250
        %v1599 = vpack.c.b16 %v1253, %v1251
        %v1600 = vpack.c.b16 %v1256, %v1254
        %v1601 = vpack.c.b16 %v1257, %v1255
        %v1602 = vpack.c.b16 %v1260, %v1258
        %v1603 = vpack.c.b16 %v1261, %v1259
        %v1604 = vpack.c.b16 %v1264, %v1262
        %v1605 = vpack.c.b16 %v1265, %v1263
        %v1606 = vpack.c.b16 %v1268, %v1266
        %v1607 = vpack.c.b16 %v1269, %v1267
        %v1608 = vpack.c.b16 %v1272, %v1270
        %v1609 = vpack.c.b16 %v1273, %v1271
        %v1610 = vpack.c.b16 %v1276, %v1274
        %v1611 = vpack.c.b16 %v1277, %v1275
        %v1612 = vpack.c.b16 %v1280, %v1278
        %v1613 = vpack.c.b16 %v1281, %v1279
        %v1614 = vpack.c.b16 %v1284, %v1282
        %v1615 = vpack.c.b16 %v1285, %v1283
        %v1616 = vpack.c.b16 %v1288, %v1286
        %v1617 = vpack.c.b16 %v1289, %v1287
        %v1618 = vpack.c.b16 %v1292, %v1290
        %v1619 = vpack.c.b16 %v1293, %v1291
        %v1620 = vpack.c.b16 %v1296, %v1294
        %v1621 = vpack.c.b16 %v1297, %v1295
        %v1622 = vpack.c.b16 %v1300, %v1298
        %v1623 = vpack.c.b16 %v1301, %v1299
        %v1624 = vpack.c.b16 %v1304, %v1302
        %v1625 = vpack.c.b16 %v1305, %v1303
        %v1626 = vpack.c.b16 %v1308, %v1306
        %v1627 = vpack.c.b16 %v1309, %v1307
        %v1628 = vpack.c.b16 %v1312, %v1310
        %v1629 = vpack.c.b16 %v1313, %v1311
        %v1630 = vpack.c.b16 %v1316, %v1314
        %v1631 = vpack.c.b16 %v1317, %v1315
        %v1632 = vpack.c.b16 %v1320, %v1318
        %v1633 = vpack.c.b16 %v1321, %v1319
        %v1634 = vpack.c.b16 %v1324, %v1322
        %v1635 = vpack.c.b16 %v1325, %v1323
        %v1636 = vpack.c.b16 %v1328, %v1326
        %v1637 = vpack.c.b16 %v1329, %v1327
        %v1638 = vpack.c.b16 %v1332, %v1330
        %v1639 = vpack.c.b16 %v1333, %v1331
        %v1640 = vpack.c.b16 %v1336, %v1334
        %v1641 = vpack.c.b16 %v1337, %v1335
        %v1642 = vpack.c.b16 %v1340, %v1338
        %v1643 = vpack.c.b16 %v1341, %v1339
        %v1644 = vpack.c.b16 %v1344, %v1342
        %v1645 = vpack.c.b16 %v1345, %v1343
        %v1646 = vpack.c.b16 %v1348, %v1346
        %v1647 = vpack.c.b16 %v1349, %v1347
        %v1648 = vpack.c.b16 %v1352, %v1350
        %v1649 = vpack.c.b16 %v1353, %v1351
        %v1650 = vpack.c.b16 %v1356, %v1354
        %v1651 = vpack.c.b16 %v1357, %v1355
        %v1652 = vpack.c.b16 %v1360, %v1358
        %v1653 = vpack.c.b16 %v1361, %v1359
        %v1654 = vpack.c.b16 %v1364, %v1362
        %v1655 = vpack.c.b16 %v1365, %v1363
        %v1656 = vpack.c.b16 %v1368, %v1366
        %v1657 = vpack.c.b16 %v1369, %v1367
        %v1658 = vpack.c.b16 %v1372, %v1370
        %v1659 = vpack.c.b16 %v1373, %v1371
        %v1660 = vpack.c.b16 %v1376, %v1374
        %v1661 = vpack.c.b16 %v1377, %v1375
        %v1662 = vpack.c.b16 %v1380, %v1378
        %v1663 = vpack.c.b16 %v1381, %v1379
        %v1664 = vpack.c.b16 %v1384, %v1382
        %v1665 = vpack.c.b16 %v1385, %v1383
        %v1666 = vpack.c.b16 %v1388, %v1386
        %v1667 = vpack.c.b16 %v1389, %v1387
        %v1668 = vpack.c.b16 %v1392, %v1390
        %v1669 = vpack.c.b16 %v1393, %v1391
        %v1670 = vpack.c.b16 %v1396, %v1394
        %v1671 = vpack.c.b16 %v1397, %v1395
        %v1672 = vpack.c.b16 %v1400, %v1398
        %v1673 = vpack.c.b16 %v1401, %v1399
        %v1674 = vpack.c.b16 %v1404, %v1402
        %v1675 = vpack.c.b16 %v1405, %v1403
        %v1676 = vpack.c.b16 %v1408, %v1406
        %v1677 = vpack.c.b16 %v1409, %v1407
        %v1678 = vpack.c.b16 %v1412, %v1410
        %v1679 = vpack.c.b16 %v1413, %v1411
        %v1680 = vpack.c.b16 %v1416, %v1414
        %v1681 = vpack.c.b16 %v1417, %v1415
        %v1682 = vpack.c.b16 %v1420, %v1418
        %v1683 = vpack.c.b16 %v1421, %v1419
        %v1684 = vpack.c.b16 %v1424, %v1422
        %v1685 = vpack.c.b16 %v1425, %v1423
        %v1686 = vpack.c.b16 %v1428, %v1426
        %v1687 = vpack.c.b16 %v1429, %v1427
        %v1688 = vpack.c.b16 %v1432, %v1430
        %v1689 = vpack.c.b16 %v1433, %v1431
        %v1690 = vpack.c.b16 %v1436, %v1434
        %v1691 = vpack.c.b16 %v1437, %v1435
        %v1692 = vpack.c.b16 %v1440, %v1438
        %v1693 = vpack.c.b16 %v1441, %v1439
        %v1694 = vpack.c.b16 %v1444, %v1442
        %v1695 = vpack.c.b16 %v1445, %v1443
        %v1696 = vpack.c.b16 %v1448, %v1446
        %v1697 = vpack.c.b16 %v1449, %v1447
        %v1698 = vpack.c.b16 %v1452, %v1450
        %v1699 = vpack.c.b16 %v1453, %v1451
        %v1700 = vpack.c.b16 %v1456, %v1454
        %v1701 = vpack.c.b16 %v1457, %v1455
        %v1702 = vpack.c.b16 %v1460, %v1458
        %v1703 = vpack.c.b16 %v1461, %v1459
        %v1704 = vpack.c.b16 %v1464, %v1462
        %v1705 = vpack.c.b16 %v1465, %v1463
        %1946 = vmatprep.subr.bf16.mxu0 %v1467
        %1947 = vmatpush1.bf16.msra.mxu0 %v1466
        %1948 = vmatprep.subr.bf16.mxu0 %v1469
        %1949 = vmatpush1.bf16.msra.mxu0 %v1468
        %1950 = vmatprep.subr.bf16.mxu0 %v1471
        %1951 = vmatpush1.bf16.msra.mxu0 %v1470
        %1952 = vmatprep.subr.bf16.mxu0 %v1473
        %1953 = vmatpush1.bf16.msra.mxu0 %v1472
        %1954 = vmatprep.subr.bf16.mxu0 %v1475
        %1955 = vmatpush1.bf16.msra.mxu0 %v1474
        %1956 = vmatprep.subr.bf16.mxu0 %v1477
        %1957 = vmatpush1.bf16.msra.mxu0 %v1476
        %1958 = vmatprep.subr.bf16.mxu0 %v1479
        %1959 = vmatpush1.bf16.msra.mxu0 %v1478
        %1960 = vmatprep.subr.bf16.mxu0 %v1481
        %1961 = vmatpush1.bf16.msra.mxu0 %v1480
        %1962 = vmatprep.subr.bf16.mxu0 %v1483
        %1963 = vmatpush1.bf16.msra.mxu0 %v1482
        %1964 = vmatprep.subr.bf16.mxu0 %v1485
        %1965 = vmatpush1.bf16.msra.mxu0 %v1484
        %1966 = vmatprep.subr.bf16.mxu0 %v1487
        %1967 = vmatpush1.bf16.msra.mxu0 %v1486
        %1968 = vmatprep.subr.bf16.mxu0 %v1489
        %1969 = vmatpush1.bf16.msra.mxu0 %v1488
        %1970 = vmatprep.subr.bf16.mxu0 %v1491
        %1971 = vmatpush1.bf16.msra.mxu0 %v1490
        %1972 = vmatprep.subr.bf16.mxu0 %v1493
        %1973 = vmatpush1.bf16.msra.mxu0 %v1492
        %1974 = vmatprep.subr.bf16.mxu0 %v1495
        %1975 = vmatpush1.bf16.msra.mxu0 %v1494
        %1976 = vmatprep.subr.bf16.mxu0 %v1497
        %1977 = vmatpush1.bf16.msra.mxu0 %v1496
        %1978 = vmatprep.mubr.bf16.mxu0 %v717
        %1979 = vmatmul.mubr.bf16.gmra.mrb[0].mxu0 %v716
        %v1980 = vpop.f32.mrb[0].mxu0
        %v1981 = vadd.f32 %v663, %v1980
        %v1982 = vpop.f32.mrb[0].mxu0
        %v1983 = vadd.f32 %v667, %v1982
        %v1984 = vpop.f32.mrb[0].mxu0
        %v1985 = vadd.f32 %v663, %v1984
        %v1986 = vpop.f32.mrb[0].mxu0
        %v1987 = vadd.f32 %v667, %v1986
        %1988 = vdwg.mxu0
        %1989 = vmatprep.subr.bf16.mxu0 %v1499
        %1990 = vmatpush1.bf16.msra.mxu0 %v1498
        %1991 = vmatprep.subr.bf16.mxu0 %v1501
        %1992 = vmatpush1.bf16.msra.mxu0 %v1500
        %1993 = vmatprep.subr.bf16.mxu0 %v1503
        %1994 = vmatpush1.bf16.msra.mxu0 %v1502
        %1995 = vmatprep.subr.bf16.mxu0 %v1505
        %1996 = vmatpush1.bf16.msra.mxu0 %v1504
        %1997 = vmatprep.subr.bf16.mxu0 %v1507
        %1998 = vmatpush1.bf16.msra.mxu0 %v1506
        %1999 = vmatprep.subr.bf16.mxu0 %v1509
        %2000 = vmatpush1.bf16.msra.mxu0 %v1508
        %2001 = vmatprep.subr.bf16.mxu0 %v1511
        %2002 = vmatpush1.bf16.msra.mxu0 %v1510
        %2003 = vmatprep.subr.bf16.mxu0 %v1513
        %2004 = vmatpush1.bf16.msra.mxu0 %v1512
        %2005 = vmatprep.subr.bf16.mxu0 %v1515
        %2006 = vmatpush1.bf16.msra.mxu0 %v1514
        %2007 = vmatprep.subr.bf16.mxu0 %v1517
        %2008 = vmatpush1.bf16.msra.mxu0 %v1516
        %2009 = vmatprep.subr.bf16.mxu0 %v1519
        %2010 = vmatpush1.bf16.msra.mxu0 %v1518
        %2011 = vmatprep.subr.bf16.mxu0 %v1521
        %2012 = vmatpush1.bf16.msra.mxu0 %v1520
        %2013 = vmatprep.subr.bf16.mxu0 %v1523
        %2014 = vmatpush1.bf16.msra.mxu0 %v1522
        %2015 = vmatprep.subr.bf16.mxu0 %v1525
        %2016 = vmatpush1.bf16.msra.mxu0 %v1524
        %2017 = vmatprep.subr.bf16.mxu0 %v1527
        %2018 = vmatpush1.bf16.msra.mxu0 %v1526
        %2019 = vmatprep.subr.bf16.mxu0 %v1529
        %2020 = vmatpush1.bf16.msra.mxu0 %v1528
        %2021 = vmatprep.mubr.bf16.mxu0 %v719
        %2022 = vmatmul.mubr.bf16.gmra.mrb[0].mxu0 %v718
        %v2023 = vpop.f32.mrb[0].mxu0
        %v2024 = vadd.f32 %v1981, %v2023
        %v2025 = vpop.f32.mrb[0].mxu0
        %v2026 = vadd.f32 %v1983, %v2025
        %v2027 = vpop.f32.mrb[0].mxu0
        %v2028 = vadd.f32 %v1985, %v2027
        %v2029 = vpop.f32.mrb[0].mxu0
        %v2030 = vadd.f32 %v1987, %v2029
        %2031 = vdwg.mxu0
        %2032 = vmatprep.subr.bf16.mxu0 %v1531
        %2033 = vmatpush1.bf16.msra.mxu0 %v1530
        %2034 = vmatprep.subr.bf16.mxu0 %v1533
        %2035 = vmatpush1.bf16.msra.mxu0 %v1532
        %2036 = vmatprep.subr.bf16.mxu0 %v1535
        %2037 = vmatpush1.bf16.msra.mxu0 %v1534
        %2038 = vmatprep.subr.bf16.mxu0 %v1537
        %2039 = vmatpush1.bf16.msra.mxu0 %v1536
        %2040 = vmatprep.subr.bf16.mxu0 %v1539
        %2041 = vmatpush1.bf16.msra.mxu0 %v1538
        %2042 = vmatprep.subr.bf16.mxu0 %v1541
        %2043 = vmatpush1.bf16.msra.mxu0 %v1540
        %2044 = vmatprep.subr.bf16.mxu0 %v1543
        %2045 = vmatpush1.bf16.msra.mxu0 %v1542
        %2046 = vmatprep.subr.bf16.mxu0 %v1545
        %2047 = vmatpush1.bf16.msra.mxu0 %v1544
        %2048 = vmatprep.subr.bf16.mxu0 %v1547
        %2049 = vmatpush1.bf16.msra.mxu0 %v1546
        %2050 = vmatprep.subr.bf16.mxu0 %v1549
        %2051 = vmatpush1.bf16.msra.mxu0 %v1548
        %2052 = vmatprep.subr.bf16.mxu0 %v1551
        %2053 = vmatpush1.bf16.msra.mxu0 %v1550
        %2054 = vmatprep.subr.bf16.mxu0 %v1553
        %2055 = vmatpush1.bf16.msra.mxu0 %v1552
        %2056 = vmatprep.subr.bf16.mxu0 %v1555
        %2057 = vmatpush1.bf16.msra.mxu0 %v1554
        %2058 = vmatprep.subr.bf16.mxu0 %v1557
        %2059 = vmatpush1.bf16.msra.mxu0 %v1556
        %2060 = vmatprep.subr.bf16.mxu0 %v1559
        %2061 = vmatpush1.bf16.msra.mxu0 %v1558
        %2062 = vmatprep.subr.bf16.mxu0 %v1561
        %2063 = vmatpush1.bf16.msra.mxu0 %v1560
        %2064 = vmatprep.mubr.bf16.mxu0 %v721
        %2065 = vmatmul.mubr.bf16.gmra.mrb[0].mxu0 %v720
        %v2066 = vpop.f32.mrb[0].mxu0
        %v2067 = vadd.f32 %v2024, %v2066
        %v2068 = vpop.f32.mrb[0].mxu0
        %v2069 = vadd.f32 %v2026, %v2068
        %v2070 = vpop.f32.mrb[0].mxu0
        %v2071 = vadd.f32 %v2028, %v2070
        %v2072 = vpop.f32.mrb[0].mxu0
        %v2073 = vadd.f32 %v2030, %v2072
        %2074 = vdwg.mxu0
        %2075 = vmatprep.subr.bf16.mxu0 %v1563
        %2076 = vmatpush1.bf16.msra.mxu0 %v1562
        %2077 = vmatprep.subr.bf16.mxu0 %v1565
        %2078 = vmatpush1.bf16.msra.mxu0 %v1564
        %2079 = vmatprep.subr.bf16.mxu0 %v1567
        %2080 = vmatpush1.bf16.msra.mxu0 %v1566
        %2081 = vmatprep.subr.bf16.mxu0 %v1569
        %2082 = vmatpush1.bf16.msra.mxu0 %v1568
        %2083 = vmatprep.subr.bf16.mxu0 %v1571
        %2084 = vmatpush1.bf16.msra.mxu0 %v1570
        %2085 = vmatprep.subr.bf16.mxu0 %v1573
        %2086 = vmatpush1.bf16.msra.mxu0 %v1572
        %2087 = vmatprep.subr.bf16.mxu0 %v1575
        %2088 = vmatpush1.bf16.msra.mxu0 %v1574
        %2089 = vmatprep.subr.bf16.mxu0 %v1577
        %2090 = vmatpush1.bf16.msra.mxu0 %v1576
        %2091 = vmatprep.subr.bf16.mxu0 %v1579
        %2092 = vmatpush1.bf16.msra.mxu0 %v1578
        %2093 = vmatprep.subr.bf16.mxu0 %v1581
        %2094 = vmatpush1.bf16.msra.mxu0 %v1580
        %2095 = vmatprep.subr.bf16.mxu0 %v1583
        %2096 = vmatpush1.bf16.msra.mxu0 %v1582
        %2097 = vmatprep.subr.bf16.mxu0 %v1585
        %2098 = vmatpush1.bf16.msra.mxu0 %v1584
        %2099 = vmatprep.subr.bf16.mxu0 %v1587
        %2100 = vmatpush1.bf16.msra.mxu0 %v1586
        %2101 = vmatprep.subr.bf16.mxu0 %v1589
        %2102 = vmatpush1.bf16.msra.mxu0 %v1588
        %2103 = vmatprep.subr.bf16.mxu0 %v1591
        %2104 = vmatpush1.bf16.msra.mxu0 %v1590
        %2105 = vmatprep.subr.bf16.mxu0 %v1593
        %2106 = vmatpush1.bf16.msra.mxu0 %v1592
        %2107 = vmatprep.mubr.bf16.mxu0 %v723
        %2108 = vmatmul.mubr.bf16.gmra.mrb[0].mxu0 %v722
        %v2109 = vpop.f32.mrb[0].mxu0
        %v2110 = vadd.f32 %v2067, %v2109
        %v2111 = vpop.f32.mrb[0].mxu0
        %v2112 = vadd.f32 %v2069, %v2111
        %v2113 = vpop.f32.mrb[0].mxu0
        %v2114 = vadd.f32 %v2071, %v2113
        %v2115 = vpop.f32.mrb[0].mxu0
        %v2116 = vadd.f32 %v2073, %v2115
        %2117 = vdwg.mxu0
        %2118 = vmatprep.subr.bf16.mxu0 %v1595
        %2119 = vmatpush1.bf16.msra.mxu0 %v1594
        %2120 = vmatprep.subr.bf16.mxu0 %v1597
        %2121 = vmatpush1.bf16.msra.mxu0 %v1596
        %2122 = vmatprep.subr.bf16.mxu0 %v1599
        %2123 = vmatpush1.bf16.msra.mxu0 %v1598
        %2124 = vmatprep.subr.bf16.mxu0 %v1601
        %2125 = vmatpush1.bf16.msra.mxu0 %v1600
        %2126 = vmatprep.subr.bf16.mxu0 %v1603
        %2127 = vmatpush1.bf16.msra.mxu0 %v1602
        %2128 = vmatprep.subr.bf16.mxu0 %v1605
        %2129 = vmatpush1.bf16.msra.mxu0 %v1604
        %2130 = vmatprep.subr.bf16.mxu0 %v1607
        %2131 = vmatpush1.bf16.msra.mxu0 %v1606
        %2132 = vmatprep.subr.bf16.mxu0 %v1609
        %2133 = vmatpush1.bf16.msra.mxu0 %v1608
        %2134 = vmatprep.subr.bf16.mxu0 %v1611
        %2135 = vmatpush1.bf16.msra.mxu0 %v1610
        %2136 = vmatprep.subr.bf16.mxu0 %v1613
        %2137 = vmatpush1.bf16.msra.mxu0 %v1612
        %2138 = vmatprep.subr.bf16.mxu0 %v1615
        %2139 = vmatpush1.bf16.msra.mxu0 %v1614
        %2140 = vmatprep.subr.bf16.mxu0 %v1617
        %2141 = vmatpush1.bf16.msra.mxu0 %v1616
        %2142 = vmatprep.subr.bf16.mxu0 %v1619
        %2143 = vmatpush1.bf16.msra.mxu0 %v1618
        %2144 = vmatprep.subr.bf16.mxu0 %v1621
        %2145 = vmatpush1.bf16.msra.mxu0 %v1620
        %2146 = vmatprep.subr.bf16.mxu0 %v1623
        %2147 = vmatpush1.bf16.msra.mxu0 %v1622
        %2148 = vmatprep.subr.bf16.mxu0 %v1625
        %2149 = vmatpush1.bf16.msra.mxu0 %v1624
        %2150 = vmatprep.mubr.bf16.mxu0 %v725
        %2151 = vmatmul.mubr.bf16.gmra.mrb[0].mxu0 %v724
        %v2152 = vpop.f32.mrb[0].mxu0
        %v2153 = vadd.f32 %v2110, %v2152
        %v2154 = vpop.f32.mrb[0].mxu0
        %v2155 = vadd.f32 %v2112, %v2154
        %v2156 = vpop.f32.mrb[0].mxu0
        %v2157 = vadd.f32 %v2114, %v2156
        %v2158 = vpop.f32.mrb[0].mxu0
        %v2159 = vadd.f32 %v2116, %v2158
        %2160 = vdwg.mxu0
        %2161 = vmatprep.subr.bf16.mxu0 %v1627
        %2162 = vmatpush1.bf16.msra.mxu0 %v1626
        %2163 = vmatprep.subr.bf16.mxu0 %v1629
        %2164 = vmatpush1.bf16.msra.mxu0 %v1628
        %2165 = vmatprep.subr.bf16.mxu0 %v1631
        %2166 = vmatpush1.bf16.msra.mxu0 %v1630
        %2167 = vmatprep.subr.bf16.mxu0 %v1633
        %2168 = vmatpush1.bf16.msra.mxu0 %v1632
        %2169 = vmatprep.subr.bf16.mxu0 %v1635
        %2170 = vmatpush1.bf16.msra.mxu0 %v1634
        %2171 = vmatprep.subr.bf16.mxu0 %v1637
        %2172 = vmatpush1.bf16.msra.mxu0 %v1636
        %2173 = vmatprep.subr.bf16.mxu0 %v1639
        %2174 = vmatpush1.bf16.msra.mxu0 %v1638
        %2175 = vmatprep.subr.bf16.mxu0 %v1641
        %2176 = vmatpush1.bf16.msra.mxu0 %v1640
        %2177 = vmatprep.subr.bf16.mxu0 %v1643
        %2178 = vmatpush1.bf16.msra.mxu0 %v1642
        %2179 = vmatprep.subr.bf16.mxu0 %v1645
        %2180 = vmatpush1.bf16.msra.mxu0 %v1644
        %2181 = vmatprep.subr.bf16.mxu0 %v1647
        %2182 = vmatpush1.bf16.msra.mxu0 %v1646
        %2183 = vmatprep.subr.bf16.mxu0 %v1649
        %2184 = vmatpush1.bf16.msra.mxu0 %v1648
        %2185 = vmatprep.subr.bf16.mxu0 %v1651
        %2186 = vmatpush1.bf16.msra.mxu0 %v1650
        %2187 = vmatprep.subr.bf16.mxu0 %v1653
        %2188 = vmatpush1.bf16.msra.mxu0 %v1652
        %2189 = vmatprep.subr.bf16.mxu0 %v1655
        %2190 = vmatpush1.bf16.msra.mxu0 %v1654
        %2191 = vmatprep.subr.bf16.mxu0 %v1657
        %2192 = vmatpush1.bf16.msra.mxu0 %v1656
        %2193 = vmatprep.mubr.bf16.mxu0 %v727
        %2194 = vmatmul.mubr.bf16.gmra.mrb[0].mxu0 %v726
        %v2195 = vpop.f32.mrb[0].mxu0
        %v2196 = vadd.f32 %v2153, %v2195
        %v2197 = vpop.f32.mrb[0].mxu0
        %v2198 = vadd.f32 %v2155, %v2197
        %v2199 = vpop.f32.mrb[0].mxu0
        %v2200 = vadd.f32 %v2157, %v2199
        %v2201 = vpop.f32.mrb[0].mxu0
        %v2202 = vadd.f32 %v2159, %v2201
        %2203 = vdwg.mxu0
        %2204 = vmatprep.subr.bf16.mxu0 %v1659
        %2205 = vmatpush1.bf16.msra.mxu0 %v1658
        %2206 = vmatprep.subr.bf16.mxu0 %v1661
        %2207 = vmatpush1.bf16.msra.mxu0 %v1660
        %2208 = vmatprep.subr.bf16.mxu0 %v1663
        %2209 = vmatpush1.bf16.msra.mxu0 %v1662
        %2210 = vmatprep.subr.bf16.mxu0 %v1665
        %2211 = vmatpush1.bf16.msra.mxu0 %v1664
        %2212 = vmatprep.subr.bf16.mxu0 %v1667
        %2213 = vmatpush1.bf16.msra.mxu0 %v1666
        %2214 = vmatprep.subr.bf16.mxu0 %v1669
        %2215 = vmatpush1.bf16.msra.mxu0 %v1668
        %2216 = vmatprep.subr.bf16.mxu0 %v1671
        %2217 = vmatpush1.bf16.msra.mxu0 %v1670
        %2218 = vmatprep.subr.bf16.mxu0 %v1673
        %2219 = vmatpush1.bf16.msra.mxu0 %v1672
        %2220 = vmatprep.subr.bf16.mxu0 %v1675
        %2221 = vmatpush1.bf16.msra.mxu0 %v1674
        %2222 = vmatprep.subr.bf16.mxu0 %v1677
        %2223 = vmatpush1.bf16.msra.mxu0 %v1676
        %2224 = vmatprep.subr.bf16.mxu0 %v1679
        %2225 = vmatpush1.bf16.msra.mxu0 %v1678
        %2226 = vmatprep.subr.bf16.mxu0 %v1681
        %2227 = vmatpush1.bf16.msra.mxu0 %v1680
        %2228 = vmatprep.subr.bf16.mxu0 %v1683
        %2229 = vmatpush1.bf16.msra.mxu0 %v1682
        %2230 = vmatprep.subr.bf16.mxu0 %v1685
        %2231 = vmatpush1.bf16.msra.mxu0 %v1684
        %2232 = vmatprep.subr.bf16.mxu0 %v1687
        %2233 = vmatpush1.bf16.msra.mxu0 %v1686
        %2234 = vmatprep.subr.bf16.mxu0 %v1689
        %2235 = vmatpush1.bf16.msra.mxu0 %v1688
        %2236 = vmatprep.mubr.bf16.mxu0 %v729
        %2237 = vmatmul.mubr.bf16.gmra.mrb[0].mxu0 %v728
        %v2238 = vpop.f32.mrb[0].mxu0
        %v2239 = vadd.f32 %v2196, %v2238
        %v2240 = vpop.f32.mrb[0].mxu0
        %v2241 = vadd.f32 %v2198, %v2240
        %v2242 = vpop.f32.mrb[0].mxu0
        %v2243 = vadd.f32 %v2200, %v2242
        %v2244 = vpop.f32.mrb[0].mxu0
        %v2245 = vadd.f32 %v2202, %v2244
        %2246 = vdwg.mxu0
        %2247 = vmatprep.subr.bf16.mxu0 %v1691
        %2248 = vmatpush1.bf16.msra.mxu0 %v1690
        %2249 = vmatprep.subr.bf16.mxu0 %v1693
        %2250 = vmatpush1.bf16.msra.mxu0 %v1692
        %2251 = vmatprep.subr.bf16.mxu0 %v1695
        %2252 = vmatpush1.bf16.msra.mxu0 %v1694
        %2253 = vmatprep.subr.bf16.mxu0 %v1697
        %2254 = vmatpush1.bf16.msra.mxu0 %v1696
        %2255 = vmatprep.subr.bf16.mxu0 %v1699
        %2256 = vmatpush1.bf16.msra.mxu0 %v1698
        %2257 = vmatprep.subr.bf16.mxu0 %v1701
        %2258 = vmatpush1.bf16.msra.mxu0 %v1700
        %2259 = vmatprep.subr.bf16.mxu0 %v1703
        %2260 = vmatpush1.bf16.msra.mxu0 %v1702
        %2261 = vmatprep.subr.bf16.mxu0 %v1705
        %2262 = vmatpush1.bf16.msra.mxu0 %v1704
        %2263 = vmatprep.subr.bf16.mxu0 0
        %2264 = vmatpush1.bf16.msra.mxu0 0
        %2265 = vmatprep.subr.bf16.mxu0 0
        %2266 = vmatpush1.bf16.msra.mxu0 0
        %2267 = vmatprep.subr.bf16.mxu0 0
        %2268 = vmatpush1.bf16.msra.mxu0 0
        %2269 = vmatprep.subr.bf16.mxu0 0
        %2270 = vmatpush1.bf16.msra.mxu0 0
        %2271 = vmatprep.subr.bf16.mxu0 0
        %2272 = vmatpush1.bf16.msra.mxu0 0
        %2273 = vmatprep.subr.bf16.mxu0 0
        %2274 = vmatpush1.bf16.msra.mxu0 0
        %2275 = vmatprep.subr.bf16.mxu0 0
        %2276 = vmatpush1.bf16.msra.mxu0 0
        %2277 = vmatprep.subr.bf16.mxu0 0
        %2278 = vmatpush1.bf16.msra.mxu0 0
        %2279 = vmatprep.mubr.bf16.mxu0 0
        %2280 = vmatmul.mubr.bf16.gmra.mrb[0].mxu0 %v730
        %v2281 = vpop.f32.mrb[0].mxu0
        %v2282 = vadd.f32 %v2239, %v2281
        %v2283 = vpop.f32.mrb[0].mxu0
        %v2284 = vadd.f32 %v2241, %v2283
        %v2285 = vpop.f32.mrb[0].mxu0
        %v2286 = vadd.f32 %v2243, %v2285
        %v2287 = vpop.f32.mrb[0].mxu0
        %v2288 = vadd.f32 %v2245, %v2287
        %2289 = vdwg.mxu0
        %v2290 = vmax.f32 %v2282, 0.0
        %v2291 = vmax.f32 %v2284, 0.0
        %v2292 = vmax.f32 %v2286, 0.0
        %v2293 = vmax.f32 %v2288, 0.0
        %v2294 = vpack.c.bf16 %v2292, %v2290
        %v2295 = vpack.c.bf16 %v2293, %v2291
        %v2296 = vld [vmem:[%s343] sm:$0xf]
        %v2297 = vld [vmem:[%s343 + $0x4] sm:$0xf]
        %v2298 = vld [vmem:[%s343 + $0x8] sm:$0xf]
        %v2299 = vld [vmem:[%s343 + $0xc] sm:$0xf]
        %v2300 = vld [vmem:[%s343 + $0x10] sm:$0xf]
        %v2301 = vld [vmem:[%s343 + $0x14] sm:$0xf]
        %v2302 = vld [vmem:[%s343 + $0x18] sm:$0xf]
        %v2303 = vld [vmem:[%s343 + $0x1c] sm:$0xf]
        %v2304 = vld [vmem:[%s343 + $0x20] sm:$0xf]
        %v2305 = vld [vmem:[%s343 + $0x24] sm:$0xf]
        %v2306 = vld [vmem:[%s343 + $0x28] sm:$0xf]
        %v2307 = vld [vmem:[%s343 + $0x2c] sm:$0xf]
        %v2308 = vld [vmem:[%s343 + $0x30] sm:$0xf]
        %v2309 = vld [vmem:[%s343 + $0x34] sm:$0xf]
        %v2310 = vld [vmem:[%s343 + $0x38] sm:$0xf]
        %v2311 = vld [vmem:[%s343 + $0x3c] sm:$0xf]
        %v2312 = vld [vmem:[%s352] sm:$0x1]
        %v2314 = vlaneseq
        %v2315 = vshrl.u32 %v2314, 7
        %v2316 = vsub.s32 0, %v2315
        %v2317 = vrot.slane %v2312, %v2316
        %v2335 = vunpack.c.l.b16 %v2296
        %v2336 = vunpack.c.l.b16 %v2297
        %v2337 = vunpack.c.l.b16 %v2298
        %v2338 = vunpack.c.l.b16 %v2299
        %v2339 = vunpack.c.l.b16 %v2300
        %v2340 = vunpack.c.l.b16 %v2301
        %v2341 = vunpack.c.l.b16 %v2302
        %v2342 = vunpack.c.l.b16 %v2303
        %v2343 = vunpack.c.l.b16 %v2304
        %v2344 = vunpack.c.l.b16 %v2305
        %v2345 = vunpack.c.l.b16 %v2306
        %v2346 = vunpack.c.l.b16 %v2307
        %v2347 = vunpack.c.l.b16 %v2308
        %v2348 = vunpack.c.l.b16 %v2309
        %v2349 = vunpack.c.l.b16 %v2310
        %v2350 = vunpack.c.l.b16 %v2311
        %v2351 = vpack.c.b16 %v2336, %v2335
        %v2352 = vpack.c.b16 %v2338, %v2337
        %v2353 = vpack.c.b16 %v2340, %v2339
        %v2354 = vpack.c.b16 %v2342, %v2341
        %v2355 = vpack.c.b16 %v2344, %v2343
        %v2356 = vpack.c.b16 %v2346, %v2345
        %v2357 = vpack.c.b16 %v2348, %v2347
        %v2358 = vpack.c.b16 %v2350, %v2349
        %2367 = vmatprep.subr.bf16.mxu0 0
        %2368 = vmatpush1.bf16.msra.mxu0 %v2351
        %2369 = vmatprep.subr.bf16.mxu0 0
        %2370 = vmatpush1.bf16.msra.mxu0 %v2352
        %2371 = vmatprep.subr.bf16.mxu0 0
        %2372 = vmatpush1.bf16.msra.mxu0 %v2353
        %2373 = vmatprep.subr.bf16.mxu0 0
        %2374 = vmatpush1.bf16.msra.mxu0 %v2354
        %2375 = vmatprep.subr.bf16.mxu0 0
        %2376 = vmatpush1.bf16.msra.mxu0 %v2355
        %2377 = vmatprep.subr.bf16.mxu0 0
        %2378 = vmatpush1.bf16.msra.mxu0 %v2356
        %2379 = vmatprep.subr.bf16.mxu0 0
        %2380 = vmatpush1.bf16.msra.mxu0 %v2357
        %2381 = vmatprep.subr.bf16.mxu0 0
        %2382 = vmatpush1.bf16.msra.mxu0 %v2358
        %2383 = vmatprep.subr.bf16.mxu0 0
        %2384 = vmatpush1.bf16.msra.mxu0 0
        %2385 = vmatprep.subr.bf16.mxu0 0
        %2386 = vmatpush1.bf16.msra.mxu0 0
        %2387 = vmatprep.subr.bf16.mxu0 0
        %2388 = vmatpush1.bf16.msra.mxu0 0
        %2389 = vmatprep.subr.bf16.mxu0 0
        %2390 = vmatpush1.bf16.msra.mxu0 0
        %2391 = vmatprep.subr.bf16.mxu0 0
        %2392 = vmatpush1.bf16.msra.mxu0 0
        %2393 = vmatprep.subr.bf16.mxu0 0
        %2394 = vmatpush1.bf16.msra.mxu0 0
        %2395 = vmatprep.subr.bf16.mxu0 0
        %2396 = vmatpush1.bf16.msra.mxu0 0
        %2397 = vmatprep.subr.bf16.mxu0 0
        %2398 = vmatpush1.bf16.msra.mxu0 0
        %2399 = vmatprep.mubr.bf16.mxu0 0
        %2400 = vmatmul.mubr.bf16.gmra.mrb[0].mxu0 %v2294
        %v2401 = vpop.f32.mrb[0].mxu0
        %v2402 = vadd.f32 %v2317, %v2401
        %v2403 = vpop.f32.mrb[0].mxu0
        %v2404 = vpop.f32.mrb[0].mxu0
        %v2405 = vadd.f32 %v2317, %v2404
        %v2406 = vpop.f32.mrb[0].mxu0
        %2407 = vdwg.mxu0
        %2408 = vst [vmem:[%s393] sm:$0xff] %v2402
        %2409 = vst [vmem:[%s393 + $0x10] sm:$0xff] %v2405
        %s2410 = scalar_lea.vmem %s343, 64 [#allocation8]
        %v2411 = vld [vmem:[%s2410] sm:$0xf]
        %v2412 = vld [vmem:[%s2410 + $0x4] sm:$0xf]
        %v2413 = vld [vmem:[%s2410 + $0x8] sm:$0xf]
        %v2414 = vld [vmem:[%s2410 + $0xc] sm:$0xf]
        %v2415 = vld [vmem:[%s2410 + $0x10] sm:$0xf]
        %v2416 = vld [vmem:[%s2410 + $0x14] sm:$0xf]
        %v2417 = vld [vmem:[%s2410 + $0x18] sm:$0xf]
        %v2418 = vld [vmem:[%s2410 + $0x1c] sm:$0xf]
        %v2419 = vld [vmem:[%s2410 + $0x20] sm:$0xf]
        %v2420 = vld [vmem:[%s2410 + $0x24] sm:$0xf]
        %v2421 = vld [vmem:[%s2410 + $0x28] sm:$0xf]
        %v2422 = vld [vmem:[%s2410 + $0x2c] sm:$0xf]
        %v2423 = vld [vmem:[%s2410 + $0x30] sm:$0xf]
        %v2424 = vld [vmem:[%s2410 + $0x34] sm:$0xf]
        %v2425 = vld [vmem:[%s2410 + $0x38] sm:$0xf]
        %v2426 = vld [vmem:[%s2410 + $0x3c] sm:$0xf]
        %s2427 = scalar_lea.vmem %s352, 1 [#allocation10]
        %v2428 = vld [vmem:[%s2427] sm:$0x1]
        %v2430 = vlaneseq
        %v2431 = vshrl.u32 %v2430, 7
        %v2432 = vsub.s32 0, %v2431
        %v2433 = vrot.slane %v2428, %v2432
        %v2451 = vunpack.c.l.b16 %v2411
        %v2452 = vunpack.c.l.b16 %v2412
        %v2453 = vunpack.c.l.b16 %v2413
        %v2454 = vunpack.c.l.b16 %v2414
        %v2455 = vunpack.c.l.b16 %v2415
        %v2456 = vunpack.c.l.b16 %v2416
        %v2457 = vunpack.c.l.b16 %v2417
        %v2458 = vunpack.c.l.b16 %v2418
        %v2459 = vunpack.c.l.b16 %v2419
        %v2460 = vunpack.c.l.b16 %v2420
        %v2461 = vunpack.c.l.b16 %v2421
        %v2462 = vunpack.c.l.b16 %v2422
        %v2463 = vunpack.c.l.b16 %v2423
        %v2464 = vunpack.c.l.b16 %v2424
        %v2465 = vunpack.c.l.b16 %v2425
        %v2466 = vunpack.c.l.b16 %v2426
        %v2467 = vpack.c.b16 %v2452, %v2451
        %v2468 = vpack.c.b16 %v2454, %v2453
        %v2469 = vpack.c.b16 %v2456, %v2455
        %v2470 = vpack.c.b16 %v2458, %v2457
        %v2471 = vpack.c.b16 %v2460, %v2459
        %v2472 = vpack.c.b16 %v2462, %v2461
        %v2473 = vpack.c.b16 %v2464, %v2463
        %v2474 = vpack.c.b16 %v2466, %v2465
        %2483 = vmatprep.subr.bf16.mxu0 0
        %2484 = vmatpush1.bf16.msra.mxu0 %v2467
        %2485 = vmatprep.subr.bf16.mxu0 0
        %2486 = vmatpush1.bf16.msra.mxu0 %v2468
        %2487 = vmatprep.subr.bf16.mxu0 0
        %2488 = vmatpush1.bf16.msra.mxu0 %v2469
        %2489 = vmatprep.subr.bf16.mxu0 0
        %2490 = vmatpush1.bf16.msra.mxu0 %v2470
        %2491 = vmatprep.subr.bf16.mxu0 0
        %2492 = vmatpush1.bf16.msra.mxu0 %v2471
        %2493 = vmatprep.subr.bf16.mxu0 0
        %2494 = vmatpush1.bf16.msra.mxu0 %v2472
        %2495 = vmatprep.subr.bf16.mxu0 0
        %2496 = vmatpush1.bf16.msra.mxu0 %v2473
        %2497 = vmatprep.subr.bf16.mxu0 0
        %2498 = vmatpush1.bf16.msra.mxu0 %v2474
        %2499 = vmatprep.subr.bf16.mxu0 0
        %2500 = vmatpush1.bf16.msra.mxu0 0
        %2501 = vmatprep.subr.bf16.mxu0 0
        %2502 = vmatpush1.bf16.msra.mxu0 0
        %2503 = vmatprep.subr.bf16.mxu0 0
        %2504 = vmatpush1.bf16.msra.mxu0 0
        %2505 = vmatprep.subr.bf16.mxu0 0
        %2506 = vmatpush1.bf16.msra.mxu0 0
        %2507 = vmatprep.subr.bf16.mxu0 0
        %2508 = vmatpush1.bf16.msra.mxu0 0
        %2509 = vmatprep.subr.bf16.mxu0 0
        %2510 = vmatpush1.bf16.msra.mxu0 0
        %2511 = vmatprep.subr.bf16.mxu0 0
        %2512 = vmatpush1.bf16.msra.mxu0 0
        %2513 = vmatprep.subr.bf16.mxu0 0
        %2514 = vmatpush1.bf16.msra.mxu0 0
        %2515 = vmatprep.mubr.bf16.mxu0 0
        %2516 = vmatmul.mubr.bf16.gmra.mrb[0].mxu0 %v2295
        %v2517 = vpop.f32.mrb[0].mxu0
        %v2518 = vadd.f32 %v2433, %v2517
        %v2519 = vpop.f32.mrb[0].mxu0
        %v2520 = vpop.f32.mrb[0].mxu0
        %v2521 = vadd.f32 %v2433, %v2520
        %v2522 = vpop.f32.mrb[0].mxu0
        %2523 = vdwg.mxu0
        %2524 = vst [vmem:[%s393 + $0x8] sm:$0xff] %v2518
        %2525 = vst [vmem:[%s393 + $0x18] sm:$0xff] %v2521
        %s2526 = sand.u32 %s178, 1
        %s2527 = scalar_lea.sflag [#allocation4], %s2526
        %s2528 = sand.u32 %s178, 1
        %s2529 = smul.addr %s2528, 32
        %s2530 = scalar_lea.vmem [#allocation11], %s2529
        // Predicated region
        $region61: #{tpu_custom_call.1} parent=39 // pred_check
          %p2531 = pneg %p188
        $region62: #{tpu_custom_call.1} parent=39 // pred_check_branch
          %2533 = sbr.rel (%p2531) target = $region64
        $region63: #{tpu_custom_call.1} parent=39 // pred_region
          %s2534 = smul.u32 2, %s30
          %s2535 = smul.u32 2, %s31
          %s2537 = ssub.s32 512, 512
          %2538 = vsyncadd %s2527, %s2537
          %s2539 = smul.addr %s2534, 4
          %s2540 = sadd.s32 %s2535, %s2539
          %s2541 = smul.addr %s2540, 128
          %s2542 = scalar_lea.hbm %s5, %s2541
          %s2543 = sshll.u32 %s2530, 4
          %s2544 = int_to_ptr.vmem [resolvable:$true] %s2543
          %2549 = dma.vmem_to_hbm [thread:$0]  %s2544, 512, %s2542, %s2527, 256, 512, 16
        $region64: #{tpu_custom_call.1} parent=39 // pred_fallthru
          _
      $region40: #{tpu_custom_call.1} parent=5 // pred_fallthru
        _
      %p2550 = scmp.le.s32.totalorder 2, %s21
      // Predicated region
      $region65: #{tpu_custom_call.1} parent=5 // pred_check
        %p2551 = pneg %p2550
      $region66: #{tpu_custom_call.1} parent=5 // pred_check_branch
        %2553 = sbr.rel (%p2551) target = $region68
      $region67: #{tpu_custom_call.1} parent=5 // pred_region
        %s2554 = ssub.s32 %s21, 2
        // Predicated region
        $region69: #{tpu_custom_call.1} parent=67 // pred_check
          %p2555 = pneg %p194
        $region70: #{tpu_custom_call.1} parent=67 // pred_check_branch
          %2557 = sbr.rel (%p2555) target = $region72
        $region71: #{tpu_custom_call.1} parent=67 // pred_region
          %s2558 = sand.u32 %s179, 1
          %s2559 = scalar_lea.sflag [#allocation4], %s2558
          %s2560 = sand.u32 %s179, 1
          %s2561 = smul.addr %s2560, 32
          %s2562 = scalar_lea.vmem [#allocation11], %s2561
          %2563 = dma.done %s2559, 512
        $region72: #{tpu_custom_call.1} parent=67 // pred_fallthru
          _
      $region68: #{tpu_custom_call.1} parent=5 // pred_fallthru
        _
    $region6: #{tpu_custom_call.1} parent=1 // loop_footer
      %s25 = sadd.s32 1, %s21
    $region7: #{tpu_custom_call.1} parent=1 // loop_footer_branch
      %20 = sbr.rel target = $region3
    $region8: #{tpu_custom_call.1} parent=1 // loop_exit
      _
    %2564 = vsyncpa [#allocation3], 1
    %s2565 = scalar_lea.sflag [#allocation3], 1
    %2566 = vsyncpa %s2565, 1
    %2567 = vsyncpa [#allocation6], 1
    %s2568 = scalar_lea.sflag [#allocation6], 1
    %2569 = vsyncpa %s2568, 1
    %2570 = vsyncpa [#allocation9], 1
    %s2571 = scalar_lea.sflag [#allocation9], 1
    %2572 = vsyncpa %s2571, 1
    %2573 = vsyncpa [#allocation4], 1
    %s2574 = scalar_lea.sflag [#allocation4], 1
    %2575 = vsyncpa %s2574, 1

</llo_original>
